<compile_context>
chip_gen: v7x
topology: tpu7x:2x2x1
jax: 0.10.0
libtpu: 0.0.40
codegen_flags: <defaults>
</compile_context>

<pallas_src>
import functools

import jax
import jax.numpy as jnp
from jax import lax
from jax.experimental import pallas as pl
from jax.experimental.pallas import tpu as pltpu


def _round_up(x, m):
    return (x + m - 1) // m * m


def _contrastive_head_kernel(emb_ref, mask_ref, cnt_ref, w_ref, b_ref, out_ref,
                             acc_ref, *, seq_len, seq_tile):
    """Masked mean pooling (streamed over seq) + projection + L2 normalize.

    emb_ref  : [TB, TS, H] bf16/f32  token-embedding tile (streamed, native dtype)
    mask_ref : [TB, TS, 1] f32       attention-mask tile (lane-splat along H)
    cnt_ref  : [TB, 1]     f32       per-row mask counts (precomputed, clamped)
    w_ref    : [H, D]      f32       projection weight (VMEM-resident)
    b_ref    : [1, D]      f32       projection bias (VMEM-resident)
    out_ref  : [TB, D]     f32
    acc_ref  : [TB, H]     f32       masked-sum accumulator (scratch)
    """
    s = pl.program_id(1)

    @pl.when(s == 0)
    def _init():
        acc_ref[...] = jnp.zeros_like(acc_ref)

    # Stream in native (bf16) precision, do the math / accumulation in f32.
    contrib = emb_ref[...].astype(jnp.float32) * mask_ref[...]       # [TB, TS, H]
    if seq_len % seq_tile:
        # Ragged tail: out-of-bounds seq positions of the last tile hold
        # garbage; zero them.  Static Python branch - only emitted when TS
        # does not divide S, so the common case pays nothing.
        pos = s * seq_tile + lax.broadcasted_iota(jnp.int32, (1, seq_tile, 1), 1)
        contrib = jnp.where(pos < seq_len, contrib, 0.0)
    acc_ref[...] += jnp.sum(contrib, axis=1)                         # [TB, H]

    @pl.when(s == pl.num_programs(1) - 1)
    def _finalize():
        # mean_pooling: sum_emb / clamp(sum_mask, 1e-9); counts pre-clamped.
        inv_cnt = pl.reciprocal(cnt_ref[...], approx=True)           # EUP slot
        pooled = acc_ref[...] * inv_cnt                              # [TB, H]

        # proj: Linear(H -> D); W resident in f32, f32 accumulation on the MXU.
        proj = jnp.dot(pooled, w_ref[...],
                       preferred_element_type=jnp.float32) + b_ref[...]

        # F.normalize(p=2, dim=1): x / clamp_min(||x||, 1e-12)  (rsqrt -> EUP)
        ss = jnp.sum(proj * proj, axis=1, keepdims=True)             # [TB, 1]
        out_ref[...] = proj * lax.rsqrt(jnp.maximum(ss, 1e-24))


@functools.partial(jax.jit, static_argnames=("tb_target",))
def contrastive_head(token_embeddings, attention_mask, proj_w, proj_b, *,
                     tb_target=64):
    """Pooling + projection + L2-normalize hot path as one tiled Pallas kernel."""
    B, S, H = token_embeddings.shape
    D = proj_w.shape[1]

    # Stream activations untouched (no f32 cast, no pad -> no extra HBM pass).
    emb = token_embeddings

    # Mask pre-shaped [B, S, 1] so the in-kernel broadcast along H is a lane
    # splat; per-row counts precomputed (clamped like torch.clamp(min=1e-9)).
    mask3 = attention_mask.astype(jnp.float32)[:, :, None]           # [B, S, 1]
    counts = jnp.maximum(jnp.sum(mask3, axis=1), 1e-9)               # [B, 1]

    w = proj_w.astype(jnp.float32)
    b2 = proj_b.reshape(1, D).astype(jnp.float32)

    # --- tile selection -----------------------------------------------------
    b8 = _round_up(B, 8)                       # f32 sublane granularity
    TB = min(_round_up(tb_target, 8), b8)
    # Keep >= 2 batch tiles when possible: batch is the only "parallel" axis,
    # so a single tile would idle one of v7x's two TensorCores.
    if b8 >= 16 and pl.cdiv(B, TB) < 2:
        TB = _round_up(pl.cdiv(b8, 2), 8)
    TS = 128 if S > 128 else S                 # lane-friendly seq tile / full seq

    def _vmem_est(tb, ts):
        emb_tile = tb * ts * H * emb.dtype.itemsize
        mask_tile = tb * ts * 4
        resident = H * D * 4 + D * 4 + tb * 4            # W + bias + counts
        out_tile = tb * D * 4
        scratch = tb * H * 4
        return 2 * (emb_tile + mask_tile + resident + out_tile) + scratch

    # Budget against v7x's 64 MiB per-TC VMEM (leave headroom for the compiler).
    while TB > 8 and _vmem_est(TB, TS) > 44 * 1024 * 1024:
        TB = max(8, _round_up(TB // 2, 8))
    vmem_limit = int(min(max(_vmem_est(TB, TS) + (8 << 20), 32 << 20), 48 << 20))

    grid = (pl.cdiv(B, TB), pl.cdiv(S, TS))    # (batch tiles, seq reduction)

    kernel = functools.partial(_contrastive_head_kernel, seq_len=S, seq_tile=TS)

    out = pl.pallas_call(
        kernel,
        out_shape=jax.ShapeDtypeStruct((B, D), jnp.float32),
        grid_spec=pltpu.PrefetchScalarGridSpec(
            num_scalar_prefetch=0,
            grid=grid,
            in_specs=[
                pl.BlockSpec((TB, TS, H), lambda i, s: (i, s, 0)),   # emb (bf16 stream)
                pl.BlockSpec((TB, TS, 1), lambda i, s: (i, s, 0)),   # mask stream
                pl.BlockSpec((TB, 1), lambda i, s: (i, 0)),          # mask counts
                pl.BlockSpec((H, D), lambda i, s: (0, 0)),           # resident W (f32)
                pl.BlockSpec((1, D), lambda i, s: (0, 0)),           # resident bias
            ],
            out_specs=pl.BlockSpec((TB, D), lambda i, s: (i, 0)),
            scratch_shapes=[
                pltpu.VMEM((TB, H), jnp.float32),    # masked-sum accumulator
            ],
        ),
        compiler_params=pltpu.CompilerParams(
            dimension_semantics=("parallel", "arbitrary"),
            vmem_limit_bytes=vmem_limit,
        ),
    )(emb, mask3, counts, w, b2)

    return out


def contrastive_model_forward(input_ids, attention_mask, params):
    """Full forward: synthetic encoder (embedding lookup) + Pallas head."""
    # Synthetic "encoder": deterministic bf16 token-embedding lookup -> [B,S,H].
    token_embeddings = jnp.take(params["embed_table"], input_ids, axis=0)
    return contrastive_head(token_embeddings, attention_mask,
                            params["proj_w"], params["proj_b"])


def _reference_forward(input_ids, attention_mask, params):
    """Pure-JAX f32 reference mirroring the PyTorch forward (sanity check)."""
    tok = jnp.take(params["embed_table"], input_ids, axis=0).astype(jnp.float32)
    m = attention_mask.astype(jnp.float32)[:, :, None]
    pooled = jnp.sum(tok * m, axis=1) / jnp.maximum(jnp.sum(m, axis=1), 1e-9)
    proj = pooled @ params["proj_w"] + params["proj_b"]
    nrm = jnp.sqrt(jnp.sum(proj * proj, axis=1, keepdims=True))
    return proj / jnp.maximum(nrm, 1e-12)


if __name__ == "__main__":
    # Small shapes consistent with the module: embedding_dim=768 -> proj 512.
    B, S, H, D_OUT, VOCAB = 2, 8, 768, 512, 100

    key = jax.random.PRNGKey(0)
    k_emb, k_w, k_b, k_ids = jax.random.split(key, 4)

    params = {
        # bf16 table -> bf16 token embeddings, i.e. what a real TPU encoder
        # emits; the kernel streams them natively and accumulates in f32.
        "embed_table": (jax.random.normal(k_emb, (VOCAB, H), jnp.float32)
                        * 0.02).astype(jnp.bfloat16),
        "proj_w": jax.random.normal(k_w, (H, D_OUT), jnp.float32) * 0.02,
        "proj_b": jax.random.normal(k_b, (D_OUT,), jnp.float32) * 0.01,
    }

    input_ids = jax.random.randint(k_ids, (B, S), 0, VOCAB, dtype=jnp.int32)
    # Ragged attention mask: first row fully attended, second row half padded.
    attention_mask = jnp.array(
        [[1] * S, [1] * (S // 2) + [0] * (S - S // 2)], dtype=jnp.int32)

    out = contrastive_model_forward(input_ids, attention_mask, params)
    out = jax.block_until_ready(out)

    ref = _reference_forward(input_ids, attention_mask, params)
    assert out.shape == (B, D_OUT), out.shape
    # bf16 embedding stream (shared with the reference) + default-precision
    # matmuls => compare with a loose tolerance.
    assert jnp.allclose(out, ref, atol=1e-2, rtol=1e-2), "mismatch vs reference"
    # Output rows should be unit-norm after F.normalize (normalize done in f32).
    assert jnp.allclose(jnp.linalg.norm(out, axis=1), 1.0, atol=2e-3)

    print("KERNEL_OK")
</pallas_src>

<mosaic_0001>
module attributes {stable_mosaic.version = 11 : i64} {
  func.func @_contrastive_head_kernel(%arg0: i32, %arg1: i32, %arg2: memref<8x8x768xbf16, #tpu.memory_space<vmem>>, %arg3: memref<8x8x1xf32, #tpu.memory_space<vmem>>, %arg4: memref<8x1xf32, #tpu.memory_space<vmem>>, %arg5: memref<768x512xf32, #tpu.memory_space<vmem>>, %arg6: memref<1x512xf32, #tpu.memory_space<vmem>>, %arg7: memref<8x512xf32, #tpu.memory_space<vmem>>, %arg8: memref<8x768xf32, #tpu.memory_space<vmem>>) attributes {dimension_semantics = [#tpu.dimension_semantics<parallel>, #tpu.dimension_semantics<arbitrary>], iteration_bounds = array<i64: 1, 1>, scalar_prefetch = 0 : i64, scratch_operands = 1 : i64, tpu.core_type = #tpu.core_type<tc>, window_params = [{transform_indices = @transform_0, window_bounds = array<i64: 8, 8, 768>}, {transform_indices = @transform_1, window_bounds = array<i64: 8, 8, 1>}, {transform_indices = @transform_2, window_bounds = array<i64: 8, 1>}, {pipeline_mode = #tpu.pipeline_mode<synchronous>, transform_indices = @transform_3, window_bounds = array<i64: 768, 512>}, {pipeline_mode = #tpu.pipeline_mode<synchronous>, transform_indices = @transform_4, window_bounds = array<i64: 1, 512>}, {transform_indices = @transform_5, window_bounds = array<i64: 8, 512>}]} {
    %c0_i32 = arith.constant 0 : i32
    %0 = arith.cmpi eq, %arg1, %c0_i32 : i32
    %1 = arith.extui %0 : i1 to i32
    %c0_i32_0 = arith.constant 0 : i32
    %2 = arith.cmpi ne, %1, %c0_i32_0 : i32
    scf.if %2 {
      %cst_12 = arith.constant 0.000000e+00 : f32
      %15 = vector.broadcast %cst_12 : f32 to vector<8x768xf32>
      %c0_13 = arith.constant 0 : index
      %c0_14 = arith.constant 0 : index
      %16 = vector.load %arg8[%c0_13, %c0_14] : memref<8x768xf32, #tpu.memory_space<vmem>>, vector<8x768xf32>
      tpu.vector_store %arg8[%c0_13, %c0_14], %15 {strides = array<i32>} : memref<8x768xf32, #tpu.memory_space<vmem>>, vector<8x768xf32>,
    } else {
    }
    %c0 = arith.constant 0 : index
    %c0_1 = arith.constant 0 : index
    %c0_2 = arith.constant 0 : index
    %3 = vector.load %arg2[%c0, %c0_1, %c0_2] : memref<8x8x768xbf16, #tpu.memory_space<vmem>>, vector<8x8x768xbf16>
    %4 = arith.extf %3 : vector<8x8x768xbf16> to vector<8x8x768xf32>
    %c0_3 = arith.constant 0 : index
    %c0_4 = arith.constant 0 : index
    %c0_5 = arith.constant 0 : index
    %5 = vector.load %arg3[%c0_3, %c0_4, %c0_5] : memref<8x8x1xf32, #tpu.memory_space<vmem>>, vector<8x8x1xf32>
    %6 = vector.broadcast %5 : vector<8x8x1xf32> to vector<8x8x768xf32>
    %7 = arith.mulf %4, %6 : vector<8x8x768xf32>
    %c0_6 = arith.constant 0 : index
    %c0_7 = arith.constant 0 : index
    %8 = vector.load %arg8[%c0_6, %c0_7] : memref<8x768xf32, #tpu.memory_space<vmem>>, vector<8x768xf32>
    %cst = arith.constant dense<0.000000e+00> : vector<8x768xf32>
    %9 = vector.multi_reduction <add>, %7, %cst [1] : vector<8x8x768xf32> to vector<8x768xf32>
    %10 = arith.addf %8, %9 : vector<8x768xf32>
    %c0_8 = arith.constant 0 : index
    %c0_9 = arith.constant 0 : index
    %11 = vector.load %arg8[%c0_8, %c0_9] : memref<8x768xf32, #tpu.memory_space<vmem>>, vector<8x768xf32>
    tpu.vector_store %arg8[%c0_8, %c0_9], %10 {strides = array<i32>} : memref<8x768xf32, #tpu.memory_space<vmem>>, vector<8x768xf32>,
    %c0_i32_10 = arith.constant 0 : i32
    %12 = arith.cmpi eq, %arg1, %c0_i32_10 : i32
    %13 = arith.extui %12 : i1 to i32
    %c0_i32_11 = arith.constant 0 : i32
    %14 = arith.cmpi ne, %13, %c0_i32_11 : i32
    scf.if %14 {
      %c0_12 = arith.constant 0 : index
      %c0_13 = arith.constant 0 : index
      %15 = vector.load %arg4[%c0_12, %c0_13] : memref<8x1xf32, #tpu.memory_space<vmem>>, vector<8x1xf32>
      %16 = tpu.reciprocal %15 {approx = true} : vector<8x1xf32> -> vector<8x1xf32>
      %c0_14 = arith.constant 0 : index
      %c0_15 = arith.constant 0 : index
      %17 = vector.load %arg8[%c0_14, %c0_15] : memref<8x768xf32, #tpu.memory_space<vmem>>, vector<8x768xf32>
      %18 = vector.broadcast %16 : vector<8x1xf32> to vector<8x768xf32>
      %19 = arith.mulf %17, %18 : vector<8x768xf32>
      %c0_16 = arith.constant 0 : index
      %c0_17 = arith.constant 0 : index
      %20 = vector.load %arg5[%c0_16, %c0_17] : memref<768x512xf32, #tpu.memory_space<vmem>>, vector<768x512xf32>
      %cst_18 = arith.constant dense<0.000000e+00> : vector<8x512xf32>
      %21 = tpu.matmul %19, %20, %cst_18 {dimension_numbers = #tpu.dot_dimension_numbers<[1], [0], [0], [1], [0, 0, 1, 1], [], []>} : vector<8x768xf32>, vector<768x512xf32>, vector<8x512xf32> -> vector<8x512xf32>
      %c0_19 = arith.constant 0 : index
      %c0_20 = arith.constant 0 : index
      %22 = vector.load %arg6[%c0_19, %c0_20] : memref<1x512xf32, #tpu.memory_space<vmem>>, vector<1x512xf32>
      %23 = vector.broadcast %22 : vector<1x512xf32> to vector<8x512xf32>
      %24 = arith.addf %21, %23 : vector<8x512xf32>
      %25 = arith.mulf %24, %24 : vector<8x512xf32>
      %cst_21 = arith.constant dense<0.000000e+00> : vector<8xf32>
      %26 = vector.multi_reduction <add>, %25, %cst_21 [1] : vector<8x512xf32> to vector<8xf32>
      %27 = vector.shape_cast %26 : vector<8xf32> to vector<8x1xf32>
      %cst_22 = arith.constant 1.000000e-24 : f32
      %28 = vector.broadcast %cst_22 : f32 to vector<8x1xf32>
      %29 = arith.maximumf %27, %28 : vector<8x1xf32>
      %30 = math.rsqrt %29 : vector<8x1xf32>
      %31 = vector.broadcast %30 : vector<8x1xf32> to vector<8x512xf32>
      %32 = arith.mulf %24, %31 : vector<8x512xf32>
      %c0_23 = arith.constant 0 : index
      %c0_24 = arith.constant 0 : index
      %33 = vector.load %arg7[%c0_23, %c0_24] : memref<8x512xf32, #tpu.memory_space<vmem>>, vector<8x512xf32>
      tpu.vector_store %arg7[%c0_23, %c0_24], %32 {strides = array<i32>} : memref<8x512xf32, #tpu.memory_space<vmem>>, vector<8x512xf32>,
    } else {
    }
    return
  }
  func.func @transform_0(%arg0: i32, %arg1: i32) -> (i32, i32, i32) {
    %c0_i32 = arith.constant 0 : i32
    %c0_i32_0 = arith.constant 0 : i32
    return %arg0, %arg1, %c0_i32 : i32, i32, i32
  }
  func.func @transform_1(%arg0: i32, %arg1: i32) -> (i32, i32, i32) {
    %c0_i32 = arith.constant 0 : i32
    %c0_i32_0 = arith.constant 0 : i32
    return %arg0, %arg1, %c0_i32 : i32, i32, i32
  }
  func.func @transform_2(%arg0: i32, %arg1: i32) -> (i32, i32) {
    %c0_i32 = arith.constant 0 : i32
    %c0_i32_0 = arith.constant 0 : i32
    return %arg0, %c0_i32 : i32, i32
  }
  func.func @transform_3(%arg0: i32, %arg1: i32) -> (i32, i32) {
    %c0_i32 = arith.constant 0 : i32
    %c0_i32_0 = arith.constant 0 : i32
    %c0_i32_1 = arith.constant 0 : i32
    return %c0_i32, %c0_i32_0 : i32, i32
  }
  func.func @transform_4(%arg0: i32, %arg1: i32) -> (i32, i32) {
    %c0_i32 = arith.constant 0 : i32
    %c0_i32_0 = arith.constant 0 : i32
    %c0_i32_1 = arith.constant 0 : i32
    return %c0_i32, %c0_i32_0 : i32, i32
  }
  func.func @transform_5(%arg0: i32, %arg1: i32) -> (i32, i32) {
    %c0_i32 = arith.constant 0 : i32
    %c0_i32_0 = arith.constant 0 : i32
    return %arg0, %c0_i32 : i32, i32
  }
}

</mosaic_0001>

<llo_original>
// kernel: contrastive_head.1
$region0: #{contrastive_head.1}
  #allocation0 [shape = 'u32[]', space=smem, size = 0x4, offset = 0x4, fixed_abs, tag = 'smem constant byte address 0x4 - core index']
  #allocation1 [shape = 'u32[144,128]{1,0:T(1,128)}', space=vmem, size = 0x12000, scoped, tag = 'internal scratch']
  #allocation2 [shape = 'f32[8,768]{1,0:T(8,128)}', space=vmem, size = 0x6000, scoped, tag = 'scratch operand']
  %s0 = inlined_call_operand.hbm [shape: bf16[2,8,768], index: 0, kind: input, shape index: {}]
  %s1 = inlined_call_operand.vmem [shape: f32[2,8,1], index: 1, kind: input, shape index: {}]
  %s2 = inlined_call_operand.vmem [shape: f32[2,1], index: 2, kind: input, shape index: {}]
  %s3 = inlined_call_operand.hbm [shape: f32[768,512], index: 3, kind: input, shape index: {}]
  %s4 = inlined_call_operand.hbm [shape: f32[1,512], index: 4, kind: input, shape index: {}]
  %s5 = inlined_call_operand.hbm [shape: f32[2,512], index: 5, kind: output, shape index: {}]
  %s6 = sld [smem:[#allocation0]]
  $region50: #{contrastive_head.1} parent=0
    _
  %s8 = ssub.s32 1, %s6
  %s9 = scalar_select 0, %s8, %s6
  $region1: #{contrastive_head.1} parent=0
    #allocation3 [shape = 'u8[98304]{0}', space=vmem, size = 0x18000, scoped, tag = 'input window, operand 0, single buffered']
    #allocation4 [shape = 's32[1]{0}', space=sflag, size = 0x4, scoped, tag = 'scoped memory for contrastive_head.1']
    #allocation5 [shape = 's32[1]{0}', space=sflag, size = 0x4, scoped, tag = 'scoped memory for contrastive_head.1']
    #allocation6 [shape = 'u8[1572864]{0}', space=vmem, size = 0x180000, scoped, tag = 'input window, operand 3, single buffered']
    #allocation7 [shape = 's32[1]{0}', space=sflag, size = 0x4, scoped, tag = 'scoped memory for contrastive_head.1']
    #allocation8 [shape = 'u8[2048]{0}', space=vmem, size = 0x800, scoped, tag = 'input window, operand 4, single buffered']
    #allocation9 [shape = 'u8[16384]{0}', space=vmem, size = 0x4000, scoped, tag = 'output window, operand 0, single buffered']
    %10 = vsyncpa [#allocation4], 0
    %11 = vsyncpa [#allocation7], 0
    %12 = vsyncpa [#allocation5], 0
    // Predicated region
    $region2: #{contrastive_head.1} parent=1 // pred_check
      _
    $region3: #{contrastive_head.1} parent=1 // pred_check_branch
      %14 = sbr.rel (0) target = $region5
    $region4: #{contrastive_head.1} parent=1 // pred_region
      %s16 = ssub.s32 3072, 768
      %17 = vsyncadd [#allocation4], %s16
      %s18 = sshll.u32 [#allocation3], 4
      %s19 = int_to_ptr.vmem [resolvable:$true] %s18
      %24 = dma.hbm_to_vmem [thread:$0]  %s0, 768, %s19, [#allocation4], 384, 384, 24
    $region5: #{contrastive_head.1} parent=1 // pred_fallthru
      _
    // Predicated region
    $region6: #{contrastive_head.1} parent=1 // pred_check
      _
    $region7: #{contrastive_head.1} parent=1 // pred_check_branch
      %26 = sbr.rel (0) target = $region9
    $region8: #{contrastive_head.1} parent=1 // pred_region
      _
    $region9: #{contrastive_head.1} parent=1 // pred_fallthru
      _
    // Predicated region
    $region10: #{contrastive_head.1} parent=1 // pred_check
      _
    $region11: #{contrastive_head.1} parent=1 // pred_check_branch
      %28 = sbr.rel (0) target = $region13
    $region12: #{contrastive_head.1} parent=1 // pred_region
      _
    $region13: #{contrastive_head.1} parent=1 // pred_fallthru
      _
    // Predicated region
    $region14: #{contrastive_head.1} parent=1 // pred_check
      _
    $region15: #{contrastive_head.1} parent=1 // pred_check_branch
      %30 = sbr.rel (0) target = $region17
    $region16: #{contrastive_head.1} parent=1 // pred_region
      %s32 = ssub.s32 49152, 49152
      %33 = vsyncadd [#allocation7], %s32
      %s34 = sshll.u32 [#allocation6], 4
      %s35 = int_to_ptr.vmem [resolvable:$true] %s34
      %40 = dma.hbm_to_vmem [thread:$0]  %s3, 49152, %s35, [#allocation7], 512, 512, 32
    $region17: #{contrastive_head.1} parent=1 // pred_fallthru
      _
    // Predicated region
    $region18: #{contrastive_head.1} parent=1 // pred_check
      _
    $region19: #{contrastive_head.1} parent=1 // pred_check_branch
      %42 = sbr.rel (0) target = $region21
    $region20: #{contrastive_head.1} parent=1 // pred_region
      %s44 = ssub.s32 64, 64
      %45 = vsyncadd [#allocation7], %s44
      %s47 = sshll.u32 [#allocation8], 4
      %s48 = int_to_ptr.vmem [resolvable:$true] %s47
      %50 = dma.hbm_to_vmem [thread:$0]  %s4, 64, %s48, [#allocation7]
    $region21: #{contrastive_head.1} parent=1 // pred_fallthru
      _
    // Predicated region
    $region22: #{contrastive_head.1} parent=1 // pred_check
      _
    $region23: #{contrastive_head.1} parent=1 // pred_check_branch
      %52 = sbr.rel (0) target = $region25
    $region24: #{contrastive_head.1} parent=1 // pred_region
      %53 = dma.done [#allocation4], 3072
    $region25: #{contrastive_head.1} parent=1 // pred_fallthru
      _
    // Predicated region
    $region26: #{contrastive_head.1} parent=1 // pred_check
      _
    $region27: #{contrastive_head.1} parent=1 // pred_check_branch
      %55 = sbr.rel (0) target = $region29
    $region28: #{contrastive_head.1} parent=1 // pred_region
      %56 = dma.done [#allocation7], 49152
    $region29: #{contrastive_head.1} parent=1 // pred_fallthru
      _
    // Predicated region
    $region30: #{contrastive_head.1} parent=1 // pred_check
      _
    $region31: #{contrastive_head.1} parent=1 // pred_check_branch
      %58 = sbr.rel (0) target = $region33
    $region32: #{contrastive_head.1} parent=1 // pred_region
      %59 = dma.done [#allocation7], 64
    $region33: #{contrastive_head.1} parent=1 // pred_fallthru
      _
    %p60 = scmp.eq.s32.totalorder 0, 0
    // Predicated region
    $region34: #{contrastive_head.1} parent=1 // pred_check
      %p61 = pneg %p60
    $region35: #{contrastive_head.1} parent=1 // pred_check_branch
      %63 = sbr.rel (%p61) target = $region37
    $region36: #{contrastive_head.1} parent=1 // pred_region
      %64 = vst [vmem:[#allocation2] sm:$0xff] 0.0
      %65 = vst [vmem:[#allocation2 + $0x8] sm:$0xff] 0.0
      %66 = vst [vmem:[#allocation2 + $0x10] sm:$0xff] 0.0
      %67 = vst [vmem:[#allocation2 + $0x18] sm:$0xff] 0.0
      %68 = vst [vmem:[#allocation2 + $0x20] sm:$0xff] 0.0
      %69 = vst [vmem:[#allocation2 + $0x28] sm:$0xff] 0.0
    $region37: #{contrastive_head.1} parent=1 // pred_fallthru
      _
    %v70 = vld [vmem:[#allocation3] sm:$0xff]
    %v71 = vld [vmem:[#allocation3 + $0x8] sm:$0xff]
    %v72 = vld [vmem:[#allocation3 + $0x10] sm:$0xff]
    %v73 = vld [vmem:[#allocation3 + $0x18] sm:$0xff]
    %v74 = vld [vmem:[#allocation3 + $0x20] sm:$0xff]
    %v75 = vld [vmem:[#allocation3 + $0x28] sm:$0xff]
    %v76 = vld [vmem:[#allocation3 + $0x30] sm:$0xff]
    %v77 = vld [vmem:[#allocation3 + $0x38] sm:$0xff]
    %v78 = vld [vmem:[#allocation3 + $0x40] sm:$0xff]
    %v79 = vld [vmem:[#allocation3 + $0x48] sm:$0xff]
    %v80 = vld [vmem:[#allocation3 + $0x50] sm:$0xff]
    %v81 = vld [vmem:[#allocation3 + $0x58] sm:$0xff]
    %v82 = vld [vmem:[#allocation3 + $0x60] sm:$0xff]
    %v83 = vld [vmem:[#allocation3 + $0x68] sm:$0xff]
    %v84 = vld [vmem:[#allocation3 + $0x70] sm:$0xff]
    %v85 = vld [vmem:[#allocation3 + $0x78] sm:$0xff]
    %v86 = vld [vmem:[#allocation3 + $0x80] sm:$0xff]
    %v87 = vld [vmem:[#allocation3 + $0x88] sm:$0xff]
    %v88 = vld [vmem:[#allocation3 + $0x90] sm:$0xff]
    %v89 = vld [vmem:[#allocation3 + $0x98] sm:$0xff]
    %v90 = vld [vmem:[#allocation3 + $0xa0] sm:$0xff]
    %v91 = vld [vmem:[#allocation3 + $0xa8] sm:$0xff]
    %v92 = vld [vmem:[#allocation3 + $0xb0] sm:$0xff]
    %v93 = vld [vmem:[#allocation3 + $0xb8] sm:$0xff]
    %v94 = vunpack.c.l.bf16 %v70
    %v95 = vunpack.c.h.bf16 %v70
    %v96 = vunpack.c.l.bf16 %v71
    %v97 = vunpack.c.h.bf16 %v71
    %v98 = vunpack.c.l.bf16 %v72
    %v99 = vunpack.c.h.bf16 %v72
    %v100 = vunpack.c.l.bf16 %v73
    %v101 = vunpack.c.h.bf16 %v73
    %v102 = vunpack.c.l.bf16 %v74
    %v103 = vunpack.c.h.bf16 %v74
    %v104 = vunpack.c.l.bf16 %v75
    %v105 = vunpack.c.h.bf16 %v75
    %v106 = vunpack.c.l.bf16 %v76
    %v107 = vunpack.c.h.bf16 %v76
    %v108 = vunpack.c.l.bf16 %v77
    %v109 = vunpack.c.h.bf16 %v77
    %v110 = vunpack.c.l.bf16 %v78
    %v111 = vunpack.c.h.bf16 %v78
    %v112 = vunpack.c.l.bf16 %v79
    %v113 = vunpack.c.h.bf16 %v79
    %v114 = vunpack.c.l.bf16 %v80
    %v115 = vunpack.c.h.bf16 %v80
    %v116 = vunpack.c.l.bf16 %v81
    %v117 = vunpack.c.h.bf16 %v81
    %v118 = vunpack.c.l.bf16 %v82
    %v119 = vunpack.c.h.bf16 %v82
    %v120 = vunpack.c.l.bf16 %v83
    %v121 = vunpack.c.h.bf16 %v83
    %v122 = vunpack.c.l.bf16 %v84
    %v123 = vunpack.c.h.bf16 %v84
    %v124 = vunpack.c.l.bf16 %v85
    %v125 = vunpack.c.h.bf16 %v85
    %v126 = vunpack.c.l.bf16 %v86
    %v127 = vunpack.c.h.bf16 %v86
    %v128 = vunpack.c.l.bf16 %v87
    %v129 = vunpack.c.h.bf16 %v87
    %v130 = vunpack.c.l.bf16 %v88
    %v131 = vunpack.c.h.bf16 %v88
    %v132 = vunpack.c.l.bf16 %v89
    %v133 = vunpack.c.h.bf16 %v89
    %v134 = vunpack.c.l.bf16 %v90
    %v135 = vunpack.c.h.bf16 %v90
    %v136 = vunpack.c.l.bf16 %v91
    %v137 = vunpack.c.h.bf16 %v91
    %v138 = vunpack.c.l.bf16 %v92
    %v139 = vunpack.c.h.bf16 %v92
    %v140 = vunpack.c.l.bf16 %v93
    %v141 = vunpack.c.h.bf16 %v93
    %v142 = vld [vmem:[%s1] sm:$0xff]
    %v143 = vld [vmem:[%s1 + $0x8] sm:$0xff]
    %v144 = vld [vmem:[%s1 + $0x10] sm:$0xff]
    %v145 = vld [vmem:[%s1 + $0x18] sm:$0xff]
    %v146 = vld [vmem:[%s1 + $0x20] sm:$0xff]
    %v147 = vld [vmem:[%s1 + $0x28] sm:$0xff]
    %v148 = vld [vmem:[%s1 + $0x30] sm:$0xff]
    %v149 = vld [vmem:[%s1 + $0x38] sm:$0xff]
    %151 = vset.pattern.permute.xlu0 0
    %152 = vperm.xlu0 %151, %v142
    %v153 = vpop.permute.xlu0 %152
    %156 = vset.pattern.permute.xlu0 0
    %157 = vperm.xlu0 %156, %v143
    %v158 = vpop.permute.xlu0 %157
    %161 = vset.pattern.permute.xlu0 0
    %162 = vperm.xlu0 %161, %v144
    %v163 = vpop.permute.xlu0 %162
    %166 = vset.pattern.permute.xlu0 0
    %167 = vperm.xlu0 %166, %v145
    %v168 = vpop.permute.xlu0 %167
    %171 = vset.pattern.permute.xlu0 0
    %172 = vperm.xlu0 %171, %v146
    %v173 = vpop.permute.xlu0 %172
    %176 = vset.pattern.permute.xlu0 0
    %177 = vperm.xlu0 %176, %v147
    %v178 = vpop.permute.xlu0 %177
    %181 = vset.pattern.permute.xlu0 0
    %182 = vperm.xlu0 %181, %v148
    %v183 = vpop.permute.xlu0 %182
    %186 = vset.pattern.permute.xlu0 0
    %187 = vperm.xlu0 %186, %v149
    %v188 = vpop.permute.xlu0 %187
    %v190 = vmul.f32 %v94, %v153
    %v191 = vmul.f32 %v95, %v153
    %v192 = vmul.f32 %v96, %v153
    %v193 = vmul.f32 %v97, %v153
    %v194 = vmul.f32 %v98, %v153
    %v195 = vmul.f32 %v99, %v153
    %v196 = vmul.f32 %v100, %v158
    %v197 = vmul.f32 %v101, %v158
    %v198 = vmul.f32 %v102, %v158
    %v199 = vmul.f32 %v103, %v158
    %v200 = vmul.f32 %v104, %v158
    %v201 = vmul.f32 %v105, %v158
    %v202 = vmul.f32 %v106, %v163
    %v203 = vmul.f32 %v107, %v163
    %v204 = vmul.f32 %v108, %v163
    %v205 = vmul.f32 %v109, %v163
    %v206 = vmul.f32 %v110, %v163
    %v207 = vmul.f32 %v111, %v163
    %v208 = vmul.f32 %v112, %v168
    %v209 = vmul.f32 %v113, %v168
    %v210 = vmul.f32 %v114, %v168
    %v211 = vmul.f32 %v115, %v168
    %v212 = vmul.f32 %v116, %v168
    %v213 = vmul.f32 %v117, %v168
    %v214 = vmul.f32 %v118, %v173
    %v215 = vmul.f32 %v119, %v173
    %v216 = vmul.f32 %v120, %v173
    %v217 = vmul.f32 %v121, %v173
    %v218 = vmul.f32 %v122, %v173
    %v219 = vmul.f32 %v123, %v173
    %v220 = vmul.f32 %v124, %v178
    %v221 = vmul.f32 %v125, %v178
    %v222 = vmul.f32 %v126, %v178
    %v223 = vmul.f32 %v127, %v178
    %v224 = vmul.f32 %v128, %v178
    %v225 = vmul.f32 %v129, %v178
    %v226 = vmul.f32 %v130, %v183
    %v227 = vmul.f32 %v131, %v183
    %v228 = vmul.f32 %v132, %v183
    %v229 = vmul.f32 %v133, %v183
    %v230 = vmul.f32 %v134, %v183
    %v231 = vmul.f32 %v135, %v183
    %v232 = vmul.f32 %v136, %v188
    %v233 = vmul.f32 %v137, %v188
    %v234 = vmul.f32 %v138, %v188
    %v235 = vmul.f32 %v139, %v188
    %v236 = vmul.f32 %v140, %v188
    %v237 = vmul.f32 %v141, %v188
    %v238 = vld [vmem:[#allocation2] sm:$0xff]
    %v239 = vld [vmem:[#allocation2 + $0x8] sm:$0xff]
    %v240 = vld [vmem:[#allocation2 + $0x10] sm:$0xff]
    %v241 = vld [vmem:[#allocation2 + $0x18] sm:$0xff]
    %v242 = vld [vmem:[#allocation2 + $0x20] sm:$0xff]
    %v243 = vld [vmem:[#allocation2 + $0x28] sm:$0xff]
    %v244 = vrot.slane %v190, 4
    %v245 = vadd.f32 %v190, %v244
    %v246 = vrot.slane %v245, 2
    %v247 = vadd.f32 %v245, %v246
    %v248 = vrot.slane %v247, 1
    %v249 = vadd.f32 %v247, %v248
    %v250 = vrot.slane %v191, 4
    %v251 = vadd.f32 %v191, %v250
    %v252 = vrot.slane %v251, 2
    %v253 = vadd.f32 %v251, %v252
    %v254 = vrot.slane %v253, 1
    %v255 = vadd.f32 %v253, %v254
    %v256 = vrot.slane %v192, 4
    %v257 = vadd.f32 %v192, %v256
    %v258 = vrot.slane %v257, 2
    %v259 = vadd.f32 %v257, %v258
    %v260 = vrot.slane %v259, 1
    %v261 = vadd.f32 %v259, %v260
    %v262 = vrot.slane %v193, 4
    %v263 = vadd.f32 %v193, %v262
    %v264 = vrot.slane %v263, 2
    %v265 = vadd.f32 %v263, %v264
    %v266 = vrot.slane %v265, 1
    %v267 = vadd.f32 %v265, %v266
    %v268 = vrot.slane %v194, 4
    %v269 = vadd.f32 %v194, %v268
    %v270 = vrot.slane %v269, 2
    %v271 = vadd.f32 %v269, %v270
    %v272 = vrot.slane %v271, 1
    %v273 = vadd.f32 %v271, %v272
    %v274 = vrot.slane %v195, 4
    %v275 = vadd.f32 %v195, %v274
    %v276 = vrot.slane %v275, 2
    %v277 = vadd.f32 %v275, %v276
    %v278 = vrot.slane %v277, 1
    %v279 = vadd.f32 %v277, %v278
    %v280 = vrot.slane %v196, 4
    %v281 = vadd.f32 %v196, %v280
    %v282 = vrot.slane %v281, 2
    %v283 = vadd.f32 %v281, %v282
    %v284 = vrot.slane %v283, 1
    %v285 = vadd.f32 %v283, %v284
    %v286 = vrot.slane %v197, 4
    %v287 = vadd.f32 %v197, %v286
    %v288 = vrot.slane %v287, 2
    %v289 = vadd.f32 %v287, %v288
    %v290 = vrot.slane %v289, 1
    %v291 = vadd.f32 %v289, %v290
    %v292 = vrot.slane %v198, 4
    %v293 = vadd.f32 %v198, %v292
    %v294 = vrot.slane %v293, 2
    %v295 = vadd.f32 %v293, %v294
    %v296 = vrot.slane %v295, 1
    %v297 = vadd.f32 %v295, %v296
    %v298 = vrot.slane %v199, 4
    %v299 = vadd.f32 %v199, %v298
    %v300 = vrot.slane %v299, 2
    %v301 = vadd.f32 %v299, %v300
    %v302 = vrot.slane %v301, 1
    %v303 = vadd.f32 %v301, %v302
    %v304 = vrot.slane %v200, 4
    %v305 = vadd.f32 %v200, %v304
    %v306 = vrot.slane %v305, 2
    %v307 = vadd.f32 %v305, %v306
    %v308 = vrot.slane %v307, 1
    %v309 = vadd.f32 %v307, %v308
    %v310 = vrot.slane %v201, 4
    %v311 = vadd.f32 %v201, %v310
    %v312 = vrot.slane %v311, 2
    %v313 = vadd.f32 %v311, %v312
    %v314 = vrot.slane %v313, 1
    %v315 = vadd.f32 %v313, %v314
    %v316 = vrot.slane %v202, 4
    %v317 = vadd.f32 %v202, %v316
    %v318 = vrot.slane %v317, 2
    %v319 = vadd.f32 %v317, %v318
    %v320 = vrot.slane %v319, 1
    %v321 = vadd.f32 %v319, %v320
    %v322 = vrot.slane %v203, 4
    %v323 = vadd.f32 %v203, %v322
    %v324 = vrot.slane %v323, 2
    %v325 = vadd.f32 %v323, %v324
    %v326 = vrot.slane %v325, 1
    %v327 = vadd.f32 %v325, %v326
    %v328 = vrot.slane %v204, 4
    %v329 = vadd.f32 %v204, %v328
    %v330 = vrot.slane %v329, 2
    %v331 = vadd.f32 %v329, %v330
    %v332 = vrot.slane %v331, 1
    %v333 = vadd.f32 %v331, %v332
    %v334 = vrot.slane %v205, 4
    %v335 = vadd.f32 %v205, %v334
    %v336 = vrot.slane %v335, 2
    %v337 = vadd.f32 %v335, %v336
    %v338 = vrot.slane %v337, 1
    %v339 = vadd.f32 %v337, %v338
    %v340 = vrot.slane %v206, 4
    %v341 = vadd.f32 %v206, %v340
    %v342 = vrot.slane %v341, 2
    %v343 = vadd.f32 %v341, %v342
    %v344 = vrot.slane %v343, 1
    %v345 = vadd.f32 %v343, %v344
    %v346 = vrot.slane %v207, 4
    %v347 = vadd.f32 %v207, %v346
    %v348 = vrot.slane %v347, 2
    %v349 = vadd.f32 %v347, %v348
    %v350 = vrot.slane %v349, 1
    %v351 = vadd.f32 %v349, %v350
    %v352 = vrot.slane %v208, 4
    %v353 = vadd.f32 %v208, %v352
    %v354 = vrot.slane %v353, 2
    %v355 = vadd.f32 %v353, %v354
    %v356 = vrot.slane %v355, 1
    %v357 = vadd.f32 %v355, %v356
    %v358 = vrot.slane %v209, 4
    %v359 = vadd.f32 %v209, %v358
    %v360 = vrot.slane %v359, 2
    %v361 = vadd.f32 %v359, %v360
    %v362 = vrot.slane %v361, 1
    %v363 = vadd.f32 %v361, %v362
    %v364 = vrot.slane %v210, 4
    %v365 = vadd.f32 %v210, %v364
    %v366 = vrot.slane %v365, 2
    %v367 = vadd.f32 %v365, %v366
    %v368 = vrot.slane %v367, 1
    %v369 = vadd.f32 %v367, %v368
    %v370 = vrot.slane %v211, 4
    %v371 = vadd.f32 %v211, %v370
    %v372 = vrot.slane %v371, 2
    %v373 = vadd.f32 %v371, %v372
    %v374 = vrot.slane %v373, 1
    %v375 = vadd.f32 %v373, %v374
    %v376 = vrot.slane %v212, 4
    %v377 = vadd.f32 %v212, %v376
    %v378 = vrot.slane %v377, 2
    %v379 = vadd.f32 %v377, %v378
    %v380 = vrot.slane %v379, 1
    %v381 = vadd.f32 %v379, %v380
    %v382 = vrot.slane %v213, 4
    %v383 = vadd.f32 %v213, %v382
    %v384 = vrot.slane %v383, 2
    %v385 = vadd.f32 %v383, %v384
    %v386 = vrot.slane %v385, 1
    %v387 = vadd.f32 %v385, %v386
    %v388 = vrot.slane %v214, 4
    %v389 = vadd.f32 %v214, %v388
    %v390 = vrot.slane %v389, 2
    %v391 = vadd.f32 %v389, %v390
    %v392 = vrot.slane %v391, 1
    %v393 = vadd.f32 %v391, %v392
    %v394 = vrot.slane %v215, 4
    %v395 = vadd.f32 %v215, %v394
    %v396 = vrot.slane %v395, 2
    %v397 = vadd.f32 %v395, %v396
    %v398 = vrot.slane %v397, 1
    %v399 = vadd.f32 %v397, %v398
    %v400 = vrot.slane %v216, 4
    %v401 = vadd.f32 %v216, %v400
    %v402 = vrot.slane %v401, 2
    %v403 = vadd.f32 %v401, %v402
    %v404 = vrot.slane %v403, 1
    %v405 = vadd.f32 %v403, %v404
    %v406 = vrot.slane %v217, 4
    %v407 = vadd.f32 %v217, %v406
    %v408 = vrot.slane %v407, 2
    %v409 = vadd.f32 %v407, %v408
    %v410 = vrot.slane %v409, 1
    %v411 = vadd.f32 %v409, %v410
    %v412 = vrot.slane %v218, 4
    %v413 = vadd.f32 %v218, %v412
    %v414 = vrot.slane %v413, 2
    %v415 = vadd.f32 %v413, %v414
    %v416 = vrot.slane %v415, 1
    %v417 = vadd.f32 %v415, %v416
    %v418 = vrot.slane %v219, 4
    %v419 = vadd.f32 %v219, %v418
    %v420 = vrot.slane %v419, 2
    %v421 = vadd.f32 %v419, %v420
    %v422 = vrot.slane %v421, 1
    %v423 = vadd.f32 %v421, %v422
    %v424 = vrot.slane %v220, 4
    %v425 = vadd.f32 %v220, %v424
    %v426 = vrot.slane %v425, 2
    %v427 = vadd.f32 %v425, %v426
    %v428 = vrot.slane %v427, 1
    %v429 = vadd.f32 %v427, %v428
    %v430 = vrot.slane %v221, 4
    %v431 = vadd.f32 %v221, %v430
    %v432 = vrot.slane %v431, 2
    %v433 = vadd.f32 %v431, %v432
    %v434 = vrot.slane %v433, 1
    %v435 = vadd.f32 %v433, %v434
    %v436 = vrot.slane %v222, 4
    %v437 = vadd.f32 %v222, %v436
    %v438 = vrot.slane %v437, 2
    %v439 = vadd.f32 %v437, %v438
    %v440 = vrot.slane %v439, 1
    %v441 = vadd.f32 %v439, %v440
    %v442 = vrot.slane %v223, 4
    %v443 = vadd.f32 %v223, %v442
    %v444 = vrot.slane %v443, 2
    %v445 = vadd.f32 %v443, %v444
    %v446 = vrot.slane %v445, 1
    %v447 = vadd.f32 %v445, %v446
    %v448 = vrot.slane %v224, 4
    %v449 = vadd.f32 %v224, %v448
    %v450 = vrot.slane %v449, 2
    %v451 = vadd.f32 %v449, %v450
    %v452 = vrot.slane %v451, 1
    %v453 = vadd.f32 %v451, %v452
    %v454 = vrot.slane %v225, 4
    %v455 = vadd.f32 %v225, %v454
    %v456 = vrot.slane %v455, 2
    %v457 = vadd.f32 %v455, %v456
    %v458 = vrot.slane %v457, 1
    %v459 = vadd.f32 %v457, %v458
    %v460 = vrot.slane %v226, 4
    %v461 = vadd.f32 %v226, %v460
    %v462 = vrot.slane %v461, 2
    %v463 = vadd.f32 %v461, %v462
    %v464 = vrot.slane %v463, 1
    %v465 = vadd.f32 %v463, %v464
    %v466 = vrot.slane %v227, 4
    %v467 = vadd.f32 %v227, %v466
    %v468 = vrot.slane %v467, 2
    %v469 = vadd.f32 %v467, %v468
    %v470 = vrot.slane %v469, 1
    %v471 = vadd.f32 %v469, %v470
    %v472 = vrot.slane %v228, 4
    %v473 = vadd.f32 %v228, %v472
    %v474 = vrot.slane %v473, 2
    %v475 = vadd.f32 %v473, %v474
    %v476 = vrot.slane %v475, 1
    %v477 = vadd.f32 %v475, %v476
    %v478 = vrot.slane %v229, 4
    %v479 = vadd.f32 %v229, %v478
    %v480 = vrot.slane %v479, 2
    %v481 = vadd.f32 %v479, %v480
    %v482 = vrot.slane %v481, 1
    %v483 = vadd.f32 %v481, %v482
    %v484 = vrot.slane %v230, 4
    %v485 = vadd.f32 %v230, %v484
    %v486 = vrot.slane %v485, 2
    %v487 = vadd.f32 %v485, %v486
    %v488 = vrot.slane %v487, 1
    %v489 = vadd.f32 %v487, %v488
    %v490 = vrot.slane %v231, 4
    %v491 = vadd.f32 %v231, %v490
    %v492 = vrot.slane %v491, 2
    %v493 = vadd.f32 %v491, %v492
    %v494 = vrot.slane %v493, 1
    %v495 = vadd.f32 %v493, %v494
    %v496 = vrot.slane %v232, 4
    %v497 = vadd.f32 %v232, %v496
    %v498 = vrot.slane %v497, 2
    %v499 = vadd.f32 %v497, %v498
    %v500 = vrot.slane %v499, 1
    %v501 = vadd.f32 %v499, %v500
    %v502 = vrot.slane %v233, 4
    %v503 = vadd.f32 %v233, %v502
    %v504 = vrot.slane %v503, 2
    %v505 = vadd.f32 %v503, %v504
    %v506 = vrot.slane %v505, 1
    %v507 = vadd.f32 %v505, %v506
    %v508 = vrot.slane %v234, 4
    %v509 = vadd.f32 %v234, %v508
    %v510 = vrot.slane %v509, 2
    %v511 = vadd.f32 %v509, %v510
    %v512 = vrot.slane %v511, 1
    %v513 = vadd.f32 %v511, %v512
    %v514 = vrot.slane %v235, 4
    %v515 = vadd.f32 %v235, %v514
    %v516 = vrot.slane %v515, 2
    %v517 = vadd.f32 %v515, %v516
    %v518 = vrot.slane %v517, 1
    %v519 = vadd.f32 %v517, %v518
    %v520 = vrot.slane %v236, 4
    %v521 = vadd.f32 %v236, %v520
    %v522 = vrot.slane %v521, 2
    %v523 = vadd.f32 %v521, %v522
    %v524 = vrot.slane %v523, 1
    %v525 = vadd.f32 %v523, %v524
    %v526 = vrot.slane %v237, 4
    %v527 = vadd.f32 %v237, %v526
    %v528 = vrot.slane %v527, 2
    %v529 = vadd.f32 %v527, %v528
    %v530 = vrot.slane %v529, 1
    %v531 = vadd.f32 %v529, %v530
    %vm580 = vcmask 1041409
    %v581 = vsel %vm580, %v285, %v249
    %vm582 = vcmask 1042434
    %v583 = vsel %vm582, %v321, %v581
    %vm584 = vcmask 1043459
    %v585 = vsel %vm584, %v357, %v583
    %vm586 = vcmask 1044484
    %v587 = vsel %vm586, %v393, %v585
    %vm588 = vcmask 1045509
    %v589 = vsel %vm588, %v429, %v587
    %vm590 = vcmask 1046534
    %v591 = vsel %vm590, %v465, %v589
    %vm592 = vcmask 1047559
    %v593 = vsel %vm592, %v501, %v591
    %v594 = vsel %vm580, %v291, %v255
    %v595 = vsel %vm582, %v327, %v594
    %v596 = vsel %vm584, %v363, %v595
    %v597 = vsel %vm586, %v399, %v596
    %v598 = vsel %vm588, %v435, %v597
    %v599 = vsel %vm590, %v471, %v598
    %v600 = vsel %vm592, %v507, %v599
    %v601 = vsel %vm580, %v297, %v261
    %v602 = vsel %vm582, %v333, %v601
    %v603 = vsel %vm584, %v369, %v602
    %v604 = vsel %vm586, %v405, %v603
    %v605 = vsel %vm588, %v441, %v604
    %v606 = vsel %vm590, %v477, %v605
    %v607 = vsel %vm592, %v513, %v606
    %v608 = vsel %vm580, %v303, %v267
    %v609 = vsel %vm582, %v339, %v608
    %v610 = vsel %vm584, %v375, %v609
    %v611 = vsel %vm586, %v411, %v610
    %v612 = vsel %vm588, %v447, %v611
    %v613 = vsel %vm590, %v483, %v612
    %v614 = vsel %vm592, %v519, %v613
    %v615 = vsel %vm580, %v309, %v273
    %v616 = vsel %vm582, %v345, %v615
    %v617 = vsel %vm584, %v381, %v616
    %v618 = vsel %vm586, %v417, %v617
    %v619 = vsel %vm588, %v453, %v618
    %v620 = vsel %vm590, %v489, %v619
    %v621 = vsel %vm592, %v525, %v620
    %v622 = vsel %vm580, %v315, %v279
    %v623 = vsel %vm582, %v351, %v622
    %v624 = vsel %vm584, %v387, %v623
    %v625 = vsel %vm586, %v423, %v624
    %v626 = vsel %vm588, %v459, %v625
    %v627 = vsel %vm590, %v495, %v626
    %v628 = vsel %vm592, %v531, %v627
    %v635 = vadd.f32 %v238, %v593
    %v636 = vadd.f32 %v239, %v600
    %v637 = vadd.f32 %v240, %v607
    %v638 = vadd.f32 %v241, %v614
    %v639 = vadd.f32 %v242, %v621
    %v640 = vadd.f32 %v243, %v628
    %641 = vst [vmem:[#allocation2] sm:$0xff] %v635
    %642 = vst [vmem:[#allocation2 + $0x8] sm:$0xff] %v636
    %643 = vst [vmem:[#allocation2 + $0x10] sm:$0xff] %v637
    %644 = vst [vmem:[#allocation2 + $0x18] sm:$0xff] %v638
    %645 = vst [vmem:[#allocation2 + $0x20] sm:$0xff] %v639
    %646 = vst [vmem:[#allocation2 + $0x28] sm:$0xff] %v640
    // Predicated region
    $region38: #{contrastive_head.1} parent=1 // pred_check
      %p647 = pneg %p60
    $region39: #{contrastive_head.1} parent=1 // pred_check_branch
      %649 = sbr.rel (%p647) target = $region41
    $region40: #{contrastive_head.1} parent=1 // pred_region
      %v650 = vld [vmem:[%s2] sm:$0xff]
      %v651 = vrcp.pop %v650
      %v652 = vld [vmem:[#allocation2] sm:$0xff]
      %v653 = vld [vmem:[#allocation2 + $0x8] sm:$0xff]
      %v654 = vld [vmem:[#allocation2 + $0x10] sm:$0xff]
      %v655 = vld [vmem:[#allocation2 + $0x18] sm:$0xff]
      %v656 = vld [vmem:[#allocation2 + $0x20] sm:$0xff]
      %v657 = vld [vmem:[#allocation2 + $0x28] sm:$0xff]
      %659 = vset.pattern.permute.xlu0 0
      %660 = vperm.xlu0 %659, %v651
      %v661 = vpop.permute.xlu0 %660
      %v663 = vmul.f32 %v652, %v661
      %v664 = vmul.f32 %v653, %v661
      %v665 = vmul.f32 %v654, %v661
      %v666 = vmul.f32 %v655, %v661
      %v667 = vmul.f32 %v656, %v661
      %v668 = vmul.f32 %v657, %v661
      %v669 = vld [vmem:[#allocation6] sm:$0xff]
      %v670 = vld [vmem:[#allocation6 + $0x8] sm:$0xff]
      %v671 = vld [vmem:[#allocation6 + $0x10] sm:$0xff]
      %v672 = vld [vmem:[#allocation6 + $0x18] sm:$0xff]
      %v673 = vld [vmem:[#allocation6 + $0x20] sm:$0xff]
      %v674 = vld [vmem:[#allocation6 + $0x28] sm:$0xff]
      %v675 = vld [vmem:[#allocation6 + $0x30] sm:$0xff]
      %v676 = vld [vmem:[#allocation6 + $0x38] sm:$0xff]
      %v677 = vld [vmem:[#allocation6 + $0x40] sm:$0xff]
      %v678 = vld [vmem:[#allocation6 + $0x48] sm:$0xff]
      %v679 = vld [vmem:[#allocation6 + $0x50] sm:$0xff]
      %v680 = vld [vmem:[#allocation6 + $0x58] sm:$0xff]
      %v681 = vld [vmem:[#allocation6 + $0x60] sm:$0xff]
      %v682 = vld [vmem:[#allocation6 + $0x68] sm:$0xff]
      %v683 = vld [vmem:[#allocation6 + $0x70] sm:$0xff]
      %v684 = vld [vmem:[#allocation6 + $0x78] sm:$0xff]
      %v685 = vld [vmem:[#allocation6 + $0x80] sm:$0xff]
      %v686 = vld [vmem:[#allocation6 + $0x88] sm:$0xff]
      %v687 = vld [vmem:[#allocation6 + $0x90] sm:$0xff]
      %v688 = vld [vmem:[#allocation6 + $0x98] sm:$0xff]
      %v689 = vld [vmem:[#allocation6 + $0xa0] sm:$0xff]
      %v690 = vld [vmem:[#allocation6 + $0xa8] sm:$0xff]
      %v691 = vld [vmem:[#allocation6 + $0xb0] sm:$0xff]
      %v692 = vld [vmem:[#allocation6 + $0xb8] sm:$0xff]
      %v693 = vld [vmem:[#allocation6 + $0xc0] sm:$0xff]
      %v694 = vld [vmem:[#allocation6 + $0xc8] sm:$0xff]
      %v695 = vld [vmem:[#allocation6 + $0xd0] sm:$0xff]
      %v696 = vld [vmem:[#allocation6 + $0xd8] sm:$0xff]
      %v697 = vld [vmem:[#allocation6 + $0xe0] sm:$0xff]
      %v698 = vld [vmem:[#allocation6 + $0xe8] sm:$0xff]
      %v699 = vld [vmem:[#allocation6 + $0xf0] sm:$0xff]
      %v700 = vld [vmem:[#allocation6 + $0xf8] sm:$0xff]
      %v701 = vld [vmem:[#allocation6 + $0x100] sm:$0xff]
      %v702 = vld [vmem:[#allocation6 + $0x108] sm:$0xff]
      %v703 = vld [vmem:[#allocation6 + $0x110] sm:$0xff]
      %v704 = vld [vmem:[#allocation6 + $0x118] sm:$0xff]
      %v705 = vld [vmem:[#allocation6 + $0x120] sm:$0xff]
      %v706 = vld [vmem:[#allocation6 + $0x128] sm:$0xff]
      %v707 = vld [vmem:[#allocation6 + $0x130] sm:$0xff]
      %v708 = vld [vmem:[#allocation6 + $0x138] sm:$0xff]
      %v709 = vld [vmem:[#allocation6 + $0x140] sm:$0xff]
      %v710 = vld [vmem:[#allocation6 + $0x148] sm:$0xff]
      %v711 = vld [vmem:[#allocation6 + $0x150] sm:$0xff]
      %v712 = vld [vmem:[#allocation6 + $0x158] sm:$0xff]
      %v713 = vld [vmem:[#allocation6 + $0x160] sm:$0xff]
      %v714 = vld [vmem:[#allocation6 + $0x168] sm:$0xff]
      %v715 = vld [vmem:[#allocation6 + $0x170] sm:$0xff]
      %v716 = vld [vmem:[#allocation6 + $0x178] sm:$0xff]
      %v717 = vld [vmem:[#allocation6 + $0x180] sm:$0xff]
      %v718 = vld [vmem:[#allocation6 + $0x188] sm:$0xff]
      %v719 = vld [vmem:[#allocation6 + $0x190] sm:$0xff]
      %v720 = vld [vmem:[#allocation6 + $0x198] sm:$0xff]
      %v721 = vld [vmem:[#allocation6 + $0x1a0] sm:$0xff]
      %v722 = vld [vmem:[#allocation6 + $0x1a8] sm:$0xff]
      %v723 = vld [vmem:[#allocation6 + $0x1b0] sm:$0xff]
      %v724 = vld [vmem:[#allocation6 + $0x1b8] sm:$0xff]
      %v725 = vld [vmem:[#allocation6 + $0x1c0] sm:$0xff]
      %v726 = vld [vmem:[#allocation6 + $0x1c8] sm:$0xff]
      %v727 = vld [vmem:[#allocation6 + $0x1d0] sm:$0xff]
      %v728 = vld [vmem:[#allocation6 + $0x1d8] sm:$0xff]
      %v729 = vld [vmem:[#allocation6 + $0x1e0] sm:$0xff]
      %v730 = vld [vmem:[#allocation6 + $0x1e8] sm:$0xff]
      %v731 = vld [vmem:[#allocation6 + $0x1f0] sm:$0xff]
      %v732 = vld [vmem:[#allocation6 + $0x1f8] sm:$0xff]
      %v733 = vld [vmem:[#allocation6 + $0x200] sm:$0xff]
      %v734 = vld [vmem:[#allocation6 + $0x208] sm:$0xff]
      %v735 = vld [vmem:[#allocation6 + $0x210] sm:$0xff]
      %v736 = vld [vmem:[#allocation6 + $0x218] sm:$0xff]
      %v737 = vld [vmem:[#allocation6 + $0x220] sm:$0xff]
      %v738 = vld [vmem:[#allocation6 + $0x228] sm:$0xff]
      %v739 = vld [vmem:[#allocation6 + $0x230] sm:$0xff]
      %v740 = vld [vmem:[#allocation6 + $0x238] sm:$0xff]
      %v741 = vld [vmem:[#allocation6 + $0x240] sm:$0xff]
      %v742 = vld [vmem:[#allocation6 + $0x248] sm:$0xff]
      %v743 = vld [vmem:[#allocation6 + $0x250] sm:$0xff]
      %v744 = vld [vmem:[#allocation6 + $0x258] sm:$0xff]
      %v745 = vld [vmem:[#allocation6 + $0x260] sm:$0xff]
      %v746 = vld [vmem:[#allocation6 + $0x268] sm:$0xff]
      %v747 = vld [vmem:[#allocation6 + $0x270] sm:$0xff]
      %v748 = vld [vmem:[#allocation6 + $0x278] sm:$0xff]
      %v749 = vld [vmem:[#allocation6 + $0x280] sm:$0xff]
      %v750 = vld [vmem:[#allocation6 + $0x288] sm:$0xff]
      %v751 = vld [vmem:[#allocation6 + $0x290] sm:$0xff]
      %v752 = vld [vmem:[#allocation6 + $0x298] sm:$0xff]
      %v753 = vld [vmem:[#allocation6 + $0x2a0] sm:$0xff]
      %v754 = vld [vmem:[#allocation6 + $0x2a8] sm:$0xff]
      %v755 = vld [vmem:[#allocation6 + $0x2b0] sm:$0xff]
      %v756 = vld [vmem:[#allocation6 + $0x2b8] sm:$0xff]
      %v757 = vld [vmem:[#allocation6 + $0x2c0] sm:$0xff]
      %v758 = vld [vmem:[#allocation6 + $0x2c8] sm:$0xff]
      %v759 = vld [vmem:[#allocation6 + $0x2d0] sm:$0xff]
      %v760 = vld [vmem:[#allocation6 + $0x2d8] sm:$0xff]
      %v761 = vld [vmem:[#allocation6 + $0x2e0] sm:$0xff]
      %v762 = vld [vmem:[#allocation6 + $0x2e8] sm:$0xff]
      %v763 = vld [vmem:[#allocation6 + $0x2f0] sm:$0xff]
      %v764 = vld [vmem:[#allocation6 + $0x2f8] sm:$0xff]
      %v765 = vld [vmem:[#allocation6 + $0x300] sm:$0xff]
      %v766 = vld [vmem:[#allocation6 + $0x308] sm:$0xff]
      %v767 = vld [vmem:[#allocation6 + $0x310] sm:$0xff]
      %v768 = vld [vmem:[#allocation6 + $0x318] sm:$0xff]
      %v769 = vld [vmem:[#allocation6 + $0x320] sm:$0xff]
      %v770 = vld [vmem:[#allocation6 + $0x328] sm:$0xff]
      %v771 = vld [vmem:[#allocation6 + $0x330] sm:$0xff]
      %v772 = vld [vmem:[#allocation6 + $0x338] sm:$0xff]
      %v773 = vld [vmem:[#allocation6 + $0x340] sm:$0xff]
      %v774 = vld [vmem:[#allocation6 + $0x348] sm:$0xff]
      %v775 = vld [vmem:[#allocation6 + $0x350] sm:$0xff]
      %v776 = vld [vmem:[#allocation6 + $0x358] sm:$0xff]
      %v777 = vld [vmem:[#allocation6 + $0x360] sm:$0xff]
      %v778 = vld [vmem:[#allocation6 + $0x368] sm:$0xff]
      %v779 = vld [vmem:[#allocation6 + $0x370] sm:$0xff]
      %v780 = vld [vmem:[#allocation6 + $0x378] sm:$0xff]
      %v781 = vld [vmem:[#allocation6 + $0x380] sm:$0xff]
      %v782 = vld [vmem:[#allocation6 + $0x388] sm:$0xff]
      %v783 = vld [vmem:[#allocation6 + $0x390] sm:$0xff]
      %v784 = vld [vmem:[#allocation6 + $0x398] sm:$0xff]
      %v785 = vld [vmem:[#allocation6 + $0x3a0] sm:$0xff]
      %v786 = vld [vmem:[#allocation6 + $0x3a8] sm:$0xff]
      %v787 = vld [vmem:[#allocation6 + $0x3b0] sm:$0xff]
      %v788 = vld [vmem:[#allocation6 + $0x3b8] sm:$0xff]
      %v789 = vld [vmem:[#allocation6 + $0x3c0] sm:$0xff]
      %v790 = vld [vmem:[#allocation6 + $0x3c8] sm:$0xff]
      %v791 = vld [vmem:[#allocation6 + $0x3d0] sm:$0xff]
      %v792 = vld [vmem:[#allocation6 + $0x3d8] sm:$0xff]
      %v793 = vld [vmem:[#allocation6 + $0x3e0] sm:$0xff]
      %v794 = vld [vmem:[#allocation6 + $0x3e8] sm:$0xff]
      %v795 = vld [vmem:[#allocation6 + $0x3f0] sm:$0xff]
      %v796 = vld [vmem:[#allocation6 + $0x3f8] sm:$0xff]
      %v797 = vld [vmem:[#allocation6 + $0x400] sm:$0xff]
      %v798 = vld [vmem:[#allocation6 + $0x408] sm:$0xff]
      %v799 = vld [vmem:[#allocation6 + $0x410] sm:$0xff]
      %v800 = vld [vmem:[#allocation6 + $0x418] sm:$0xff]
      %v801 = vld [vmem:[#allocation6 + $0x420] sm:$0xff]
      %v802 = vld [vmem:[#allocation6 + $0x428] sm:$0xff]
      %v803 = vld [vmem:[#allocation6 + $0x430] sm:$0xff]
      %v804 = vld [vmem:[#allocation6 + $0x438] sm:$0xff]
      %v805 = vld [vmem:[#allocation6 + $0x440] sm:$0xff]
      %v806 = vld [vmem:[#allocation6 + $0x448] sm:$0xff]
      %v807 = vld [vmem:[#allocation6 + $0x450] sm:$0xff]
      %v808 = vld [vmem:[#allocation6 + $0x458] sm:$0xff]
      %v809 = vld [vmem:[#allocation6 + $0x460] sm:$0xff]
      %v810 = vld [vmem:[#allocation6 + $0x468] sm:$0xff]
      %v811 = vld [vmem:[#allocation6 + $0x470] sm:$0xff]
      %v812 = vld [vmem:[#allocation6 + $0x478] sm:$0xff]
      %v813 = vld [vmem:[#allocation6 + $0x480] sm:$0xff]
      %v814 = vld [vmem:[#allocation6 + $0x488] sm:$0xff]
      %v815 = vld [vmem:[#allocation6 + $0x490] sm:$0xff]
      %v816 = vld [vmem:[#allocation6 + $0x498] sm:$0xff]
      %v817 = vld [vmem:[#allocation6 + $0x4a0] sm:$0xff]
      %v818 = vld [vmem:[#allocation6 + $0x4a8] sm:$0xff]
      %v819 = vld [vmem:[#allocation6 + $0x4b0] sm:$0xff]
      %v820 = vld [vmem:[#allocation6 + $0x4b8] sm:$0xff]
      %v821 = vld [vmem:[#allocation6 + $0x4c0] sm:$0xff]
      %v822 = vld [vmem:[#allocation6 + $0x4c8] sm:$0xff]
      %v823 = vld [vmem:[#allocation6 + $0x4d0] sm:$0xff]
      %v824 = vld [vmem:[#allocation6 + $0x4d8] sm:$0xff]
      %v825 = vld [vmem:[#allocation6 + $0x4e0] sm:$0xff]
      %v826 = vld [vmem:[#allocation6 + $0x4e8] sm:$0xff]
      %v827 = vld [vmem:[#allocation6 + $0x4f0] sm:$0xff]
      %v828 = vld [vmem:[#allocation6 + $0x4f8] sm:$0xff]
      %v829 = vld [vmem:[#allocation6 + $0x500] sm:$0xff]
      %v830 = vld [vmem:[#allocation6 + $0x508] sm:$0xff]
      %v831 = vld [vmem:[#allocation6 + $0x510] sm:$0xff]
      %v832 = vld [vmem:[#allocation6 + $0x518] sm:$0xff]
      %v833 = vld [vmem:[#allocation6 + $0x520] sm:$0xff]
      %v834 = vld [vmem:[#allocation6 + $0x528] sm:$0xff]
      %v835 = vld [vmem:[#allocation6 + $0x530] sm:$0xff]
      %v836 = vld [vmem:[#allocation6 + $0x538] sm:$0xff]
      %v837 = vld [vmem:[#allocation6 + $0x540] sm:$0xff]
      %v838 = vld [vmem:[#allocation6 + $0x548] sm:$0xff]
      %v839 = vld [vmem:[#allocation6 + $0x550] sm:$0xff]
      %v840 = vld [vmem:[#allocation6 + $0x558] sm:$0xff]
      %v841 = vld [vmem:[#allocation6 + $0x560] sm:$0xff]
      %v842 = vld [vmem:[#allocation6 + $0x568] sm:$0xff]
      %v843 = vld [vmem:[#allocation6 + $0x570] sm:$0xff]
      %v844 = vld [vmem:[#allocation6 + $0x578] sm:$0xff]
      %v845 = vld [vmem:[#allocation6 + $0x580] sm:$0xff]
      %v846 = vld [vmem:[#allocation6 + $0x588] sm:$0xff]
      %v847 = vld [vmem:[#allocation6 + $0x590] sm:$0xff]
      %v848 = vld [vmem:[#allocation6 + $0x598] sm:$0xff]
      %v849 = vld [vmem:[#allocation6 + $0x5a0] sm:$0xff]
      %v850 = vld [vmem:[#allocation6 + $0x5a8] sm:$0xff]
      %v851 = vld [vmem:[#allocation6 + $0x5b0] sm:$0xff]
      %v852 = vld [vmem:[#allocation6 + $0x5b8] sm:$0xff]
      %v853 = vld [vmem:[#allocation6 + $0x5c0] sm:$0xff]
      %v854 = vld [vmem:[#allocation6 + $0x5c8] sm:$0xff]
      %v855 = vld [vmem:[#allocation6 + $0x5d0] sm:$0xff]
      %v856 = vld [vmem:[#allocation6 + $0x5d8] sm:$0xff]
      %v857 = vld [vmem:[#allocation6 + $0x5e0] sm:$0xff]
      %v858 = vld [vmem:[#allocation6 + $0x5e8] sm:$0xff]
      %v859 = vld [vmem:[#allocation6 + $0x5f0] sm:$0xff]
      %v860 = vld [vmem:[#allocation6 + $0x5f8] sm:$0xff]
      %v861 = vld [vmem:[#allocation6 + $0x600] sm:$0xff]
      %v862 = vld [vmem:[#allocation6 + $0x608] sm:$0xff]
      %v863 = vld [vmem:[#allocation6 + $0x610] sm:$0xff]
      %v864 = vld [vmem:[#allocation6 + $0x618] sm:$0xff]
      %v865 = vld [vmem:[#allocation6 + $0x620] sm:$0xff]
      %v866 = vld [vmem:[#allocation6 + $0x628] sm:$0xff]
      %v867 = vld [vmem:[#allocation6 + $0x630] sm:$0xff]
      %v868 = vld [vmem:[#allocation6 + $0x638] sm:$0xff]
      %v869 = vld [vmem:[#allocation6 + $0x640] sm:$0xff]
      %v870 = vld [vmem:[#allocation6 + $0x648] sm:$0xff]
      %v871 = vld [vmem:[#allocation6 + $0x650] sm:$0xff]
      %v872 = vld [vmem:[#allocation6 + $0x658] sm:$0xff]
      %v873 = vld [vmem:[#allocation6 + $0x660] sm:$0xff]
      %v874 = vld [vmem:[#allocation6 + $0x668] sm:$0xff]
      %v875 = vld [vmem:[#allocation6 + $0x670] sm:$0xff]
      %v876 = vld [vmem:[#allocation6 + $0x678] sm:$0xff]
      %v877 = vld [vmem:[#allocation6 + $0x680] sm:$0xff]
      %v878 = vld [vmem:[#allocation6 + $0x688] sm:$0xff]
      %v879 = vld [vmem:[#allocation6 + $0x690] sm:$0xff]
      %v880 = vld [vmem:[#allocation6 + $0x698] sm:$0xff]
      %v881 = vld [vmem:[#allocation6 + $0x6a0] sm:$0xff]
      %v882 = vld [vmem:[#allocation6 + $0x6a8] sm:$0xff]
      %v883 = vld [vmem:[#allocation6 + $0x6b0] sm:$0xff]
      %v884 = vld [vmem:[#allocation6 + $0x6b8] sm:$0xff]
      %v885 = vld [vmem:[#allocation6 + $0x6c0] sm:$0xff]
      %v886 = vld [vmem:[#allocation6 + $0x6c8] sm:$0xff]
      %v887 = vld [vmem:[#allocation6 + $0x6d0] sm:$0xff]
      %v888 = vld [vmem:[#allocation6 + $0x6d8] sm:$0xff]
      %v889 = vld [vmem:[#allocation6 + $0x6e0] sm:$0xff]
      %v890 = vld [vmem:[#allocation6 + $0x6e8] sm:$0xff]
      %v891 = vld [vmem:[#allocation6 + $0x6f0] sm:$0xff]
      %v892 = vld [vmem:[#allocation6 + $0x6f8] sm:$0xff]
      %v893 = vld [vmem:[#allocation6 + $0x700] sm:$0xff]
      %v894 = vld [vmem:[#allocation6 + $0x708] sm:$0xff]
      %v895 = vld [vmem:[#allocation6 + $0x710] sm:$0xff]
      %v896 = vld [vmem:[#allocation6 + $0x718] sm:$0xff]
      %v897 = vld [vmem:[#allocation6 + $0x720] sm:$0xff]
      %v898 = vld [vmem:[#allocation6 + $0x728] sm:$0xff]
      %v899 = vld [vmem:[#allocation6 + $0x730] sm:$0xff]
      %v900 = vld [vmem:[#allocation6 + $0x738] sm:$0xff]
      %v901 = vld [vmem:[#allocation6 + $0x740] sm:$0xff]
      %v902 = vld [vmem:[#allocation6 + $0x748] sm:$0xff]
      %v903 = vld [vmem:[#allocation6 + $0x750] sm:$0xff]
      %v904 = vld [vmem:[#allocation6 + $0x758] sm:$0xff]
      %v905 = vld [vmem:[#allocation6 + $0x760] sm:$0xff]
      %v906 = vld [vmem:[#allocation6 + $0x768] sm:$0xff]
      %v907 = vld [vmem:[#allocation6 + $0x770] sm:$0xff]
      %v908 = vld [vmem:[#allocation6 + $0x778] sm:$0xff]
      %v909 = vld [vmem:[#allocation6 + $0x780] sm:$0xff]
      %v910 = vld [vmem:[#allocation6 + $0x788] sm:$0xff]
      %v911 = vld [vmem:[#allocation6 + $0x790] sm:$0xff]
      %v912 = vld [vmem:[#allocation6 + $0x798] sm:$0xff]
      %v913 = vld [vmem:[#allocation6 + $0x7a0] sm:$0xff]
      %v914 = vld [vmem:[#allocation6 + $0x7a8] sm:$0xff]
      %v915 = vld [vmem:[#allocation6 + $0x7b0] sm:$0xff]
      %v916 = vld [vmem:[#allocation6 + $0x7b8] sm:$0xff]
      %v917 = vld [vmem:[#allocation6 + $0x7c0] sm:$0xff]
      %v918 = vld [vmem:[#allocation6 + $0x7c8] sm:$0xff]
      %v919 = vld [vmem:[#allocation6 + $0x7d0] sm:$0xff]
      %v920 = vld [vmem:[#allocation6 + $0x7d8] sm:$0xff]
      %v921 = vld [vmem:[#allocation6 + $0x7e0] sm:$0xff]
      %v922 = vld [vmem:[#allocation6 + $0x7e8] sm:$0xff]
      %v923 = vld [vmem:[#allocation6 + $0x7f0] sm:$0xff]
      %v924 = vld [vmem:[#allocation6 + $0x7f8] sm:$0xff]
      %v925 = vld [vmem:[#allocation6 + $0x800] sm:$0xff]
      %v926 = vld [vmem:[#allocation6 + $0x808] sm:$0xff]
      %v927 = vld [vmem:[#allocation6 + $0x810] sm:$0xff]
      %v928 = vld [vmem:[#allocation6 + $0x818] sm:$0xff]
      %v929 = vld [vmem:[#allocation6 + $0x820] sm:$0xff]
      %v930 = vld [vmem:[#allocation6 + $0x828] sm:$0xff]
      %v931 = vld [vmem:[#allocation6 + $0x830] sm:$0xff]
      %v932 = vld [vmem:[#allocation6 + $0x838] sm:$0xff]
      %v933 = vld [vmem:[#allocation6 + $0x840] sm:$0xff]
      %v934 = vld [vmem:[#allocation6 + $0x848] sm:$0xff]
      %v935 = vld [vmem:[#allocation6 + $0x850] sm:$0xff]
      %v936 = vld [vmem:[#allocation6 + $0x858] sm:$0xff]
      %v937 = vld [vmem:[#allocation6 + $0x860] sm:$0xff]
      %v938 = vld [vmem:[#allocation6 + $0x868] sm:$0xff]
      %v939 = vld [vmem:[#allocation6 + $0x870] sm:$0xff]
      %v940 = vld [vmem:[#allocation6 + $0x878] sm:$0xff]
      %v941 = vld [vmem:[#allocation6 + $0x880] sm:$0xff]
      %v942 = vld [vmem:[#allocation6 + $0x888] sm:$0xff]
      %v943 = vld [vmem:[#allocation6 + $0x890] sm:$0xff]
      %v944 = vld [vmem:[#allocation6 + $0x898] sm:$0xff]
      %v945 = vld [vmem:[#allocation6 + $0x8a0] sm:$0xff]
      %v946 = vld [vmem:[#allocation6 + $0x8a8] sm:$0xff]
      %v947 = vld [vmem:[#allocation6 + $0x8b0] sm:$0xff]
      %v948 = vld [vmem:[#allocation6 + $0x8b8] sm:$0xff]
      %v949 = vld [vmem:[#allocation6 + $0x8c0] sm:$0xff]
      %v950 = vld [vmem:[#allocation6 + $0x8c8] sm:$0xff]
      %v951 = vld [vmem:[#allocation6 + $0x8d0] sm:$0xff]
      %v952 = vld [vmem:[#allocation6 + $0x8d8] sm:$0xff]
      %v953 = vld [vmem:[#allocation6 + $0x8e0] sm:$0xff]
      %v954 = vld [vmem:[#allocation6 + $0x8e8] sm:$0xff]
      %v955 = vld [vmem:[#allocation6 + $0x8f0] sm:$0xff]
      %v956 = vld [vmem:[#allocation6 + $0x8f8] sm:$0xff]
      %v957 = vld [vmem:[#allocation6 + $0x900] sm:$0xff]
      %v958 = vld [vmem:[#allocation6 + $0x908] sm:$0xff]
      %v959 = vld [vmem:[#allocation6 + $0x910] sm:$0xff]
      %v960 = vld [vmem:[#allocation6 + $0x918] sm:$0xff]
      %v961 = vld [vmem:[#allocation6 + $0x920] sm:$0xff]
      %v962 = vld [vmem:[#allocation6 + $0x928] sm:$0xff]
      %v963 = vld [vmem:[#allocation6 + $0x930] sm:$0xff]
      %v964 = vld [vmem:[#allocation6 + $0x938] sm:$0xff]
      %v965 = vld [vmem:[#allocation6 + $0x940] sm:$0xff]
      %v966 = vld [vmem:[#allocation6 + $0x948] sm:$0xff]
      %v967 = vld [vmem:[#allocation6 + $0x950] sm:$0xff]
      %v968 = vld [vmem:[#allocation6 + $0x958] sm:$0xff]
      %v969 = vld [vmem:[#allocation6 + $0x960] sm:$0xff]
      %v970 = vld [vmem:[#allocation6 + $0x968] sm:$0xff]
      %v971 = vld [vmem:[#allocation6 + $0x970] sm:$0xff]
      %v972 = vld [vmem:[#allocation6 + $0x978] sm:$0xff]
      %v973 = vld [vmem:[#allocation6 + $0x980] sm:$0xff]
      %v974 = vld [vmem:[#allocation6 + $0x988] sm:$0xff]
      %v975 = vld [vmem:[#allocation6 + $0x990] sm:$0xff]
      %v976 = vld [vmem:[#allocation6 + $0x998] sm:$0xff]
      %v977 = vld [vmem:[#allocation6 + $0x9a0] sm:$0xff]
      %v978 = vld [vmem:[#allocation6 + $0x9a8] sm:$0xff]
      %v979 = vld [vmem:[#allocation6 + $0x9b0] sm:$0xff]
      %v980 = vld [vmem:[#allocation6 + $0x9b8] sm:$0xff]
      %v981 = vld [vmem:[#allocation6 + $0x9c0] sm:$0xff]
      %v982 = vld [vmem:[#allocation6 + $0x9c8] sm:$0xff]
      %v983 = vld [vmem:[#allocation6 + $0x9d0] sm:$0xff]
      %v984 = vld [vmem:[#allocation6 + $0x9d8] sm:$0xff]
      %v985 = vld [vmem:[#allocation6 + $0x9e0] sm:$0xff]
      %v986 = vld [vmem:[#allocation6 + $0x9e8] sm:$0xff]
      %v987 = vld [vmem:[#allocation6 + $0x9f0] sm:$0xff]
      %v988 = vld [vmem:[#allocation6 + $0x9f8] sm:$0xff]
      %v989 = vld [vmem:[#allocation6 + $0xa00] sm:$0xff]
      %v990 = vld [vmem:[#allocation6 + $0xa08] sm:$0xff]
      %v991 = vld [vmem:[#allocation6 + $0xa10] sm:$0xff]
      %v992 = vld [vmem:[#allocation6 + $0xa18] sm:$0xff]
      %v993 = vld [vmem:[#allocation6 + $0xa20] sm:$0xff]
      %v994 = vld [vmem:[#allocation6 + $0xa28] sm:$0xff]
      %v995 = vld [vmem:[#allocation6 + $0xa30] sm:$0xff]
      %v996 = vld [vmem:[#allocation6 + $0xa38] sm:$0xff]
      %v997 = vld [vmem:[#allocation6 + $0xa40] sm:$0xff]
      %v998 = vld [vmem:[#allocation6 + $0xa48] sm:$0xff]
      %v999 = vld [vmem:[#allocation6 + $0xa50] sm:$0xff]
      %v1000 = vld [vmem:[#allocation6 + $0xa58] sm:$0xff]
      %v1001 = vld [vmem:[#allocation6 + $0xa60] sm:$0xff]
      %v1002 = vld [vmem:[#allocation6 + $0xa68] sm:$0xff]
      %v1003 = vld [vmem:[#allocation6 + $0xa70] sm:$0xff]
      %v1004 = vld [vmem:[#allocation6 + $0xa78] sm:$0xff]
      %v1005 = vld [vmem:[#allocation6 + $0xa80] sm:$0xff]
      %v1006 = vld [vmem:[#allocation6 + $0xa88] sm:$0xff]
      %v1007 = vld [vmem:[#allocation6 + $0xa90] sm:$0xff]
      %v1008 = vld [vmem:[#allocation6 + $0xa98] sm:$0xff]
      %v1009 = vld [vmem:[#allocation6 + $0xaa0] sm:$0xff]
      %v1010 = vld [vmem:[#allocation6 + $0xaa8] sm:$0xff]
      %v1011 = vld [vmem:[#allocation6 + $0xab0] sm:$0xff]
      %v1012 = vld [vmem:[#allocation6 + $0xab8] sm:$0xff]
      %v1013 = vld [vmem:[#allocation6 + $0xac0] sm:$0xff]
      %v1014 = vld [vmem:[#allocation6 + $0xac8] sm:$0xff]
      %v1015 = vld [vmem:[#allocation6 + $0xad0] sm:$0xff]
      %v1016 = vld [vmem:[#allocation6 + $0xad8] sm:$0xff]
      %v1017 = vld [vmem:[#allocation6 + $0xae0] sm:$0xff]
      %v1018 = vld [vmem:[#allocation6 + $0xae8] sm:$0xff]
      %v1019 = vld [vmem:[#allocation6 + $0xaf0] sm:$0xff]
      %v1020 = vld [vmem:[#allocation6 + $0xaf8] sm:$0xff]
      %v1021 = vld [vmem:[#allocation6 + $0xb00] sm:$0xff]
      %v1022 = vld [vmem:[#allocation6 + $0xb08] sm:$0xff]
      %v1023 = vld [vmem:[#allocation6 + $0xb10] sm:$0xff]
      %v1024 = vld [vmem:[#allocation6 + $0xb18] sm:$0xff]
      %v1025 = vld [vmem:[#allocation6 + $0xb20] sm:$0xff]
      %v1026 = vld [vmem:[#allocation6 + $0xb28] sm:$0xff]
      %v1027 = vld [vmem:[#allocation6 + $0xb30] sm:$0xff]
      %v1028 = vld [vmem:[#allocation6 + $0xb38] sm:$0xff]
      %v1029 = vld [vmem:[#allocation6 + $0xb40] sm:$0xff]
      %v1030 = vld [vmem:[#allocation6 + $0xb48] sm:$0xff]
      %v1031 = vld [vmem:[#allocation6 + $0xb50] sm:$0xff]
      %v1032 = vld [vmem:[#allocation6 + $0xb58] sm:$0xff]
      %v1033 = vld [vmem:[#allocation6 + $0xb60] sm:$0xff]
      %v1034 = vld [vmem:[#allocation6 + $0xb68] sm:$0xff]
      %v1035 = vld [vmem:[#allocation6 + $0xb70] sm:$0xff]
      %v1036 = vld [vmem:[#allocation6 + $0xb78] sm:$0xff]
      %v1037 = vld [vmem:[#allocation6 + $0xb80] sm:$0xff]
      %v1038 = vld [vmem:[#allocation6 + $0xb88] sm:$0xff]
      %v1039 = vld [vmem:[#allocation6 + $0xb90] sm:$0xff]
      %v1040 = vld [vmem:[#allocation6 + $0xb98] sm:$0xff]
      %v1041 = vld [vmem:[#allocation6 + $0xba0] sm:$0xff]
      %v1042 = vld [vmem:[#allocation6 + $0xba8] sm:$0xff]
      %v1043 = vld [vmem:[#allocation6 + $0xbb0] sm:$0xff]
      %v1044 = vld [vmem:[#allocation6 + $0xbb8] sm:$0xff]
      %v1045 = vld [vmem:[#allocation6 + $0xbc0] sm:$0xff]
      %v1046 = vld [vmem:[#allocation6 + $0xbc8] sm:$0xff]
      %v1047 = vld [vmem:[#allocation6 + $0xbd0] sm:$0xff]
      %v1048 = vld [vmem:[#allocation6 + $0xbd8] sm:$0xff]
      %v1049 = vld [vmem:[#allocation6 + $0xbe0] sm:$0xff]
      %v1050 = vld [vmem:[#allocation6 + $0xbe8] sm:$0xff]
      %v1051 = vld [vmem:[#allocation6 + $0xbf0] sm:$0xff]
      %v1052 = vld [vmem:[#allocation6 + $0xbf8] sm:$0xff]
      %v1053 = vld [vmem:[#allocation8] sm:$0xf]
      %v1055 = vlaneseq
      %v1056 = vshrl.u32 %v1055, 7
      %v1057 = vsub.s32 0, %v1056
      %v1058 = vrot.slane %v1053, %v1057
      %v1059 = vlaneseq
      %v1060 = vshrl.u32 %v1059, 7
      %v1061 = vsub.s32 1, %v1060
      %v1062 = vrot.slane %v1053, %v1061
      %v1063 = vlaneseq
      %v1064 = vshrl.u32 %v1063, 7
      %v1065 = vsub.s32 2, %v1064
      %v1066 = vrot.slane %v1053, %v1065
      %v1067 = vlaneseq
      %v1068 = vshrl.u32 %v1067, 7
      %v1069 = vsub.s32 3, %v1068
      %v1070 = vrot.slane %v1053, %v1069
      %1075 = vmatprep.subr.mxu0 %v670
      %1076 = vmatpush1.msra.mxu0 %v669
      %1077 = vmatprep.subr.mxu0 %v674
      %1078 = vmatpush1.msra.mxu0 %v673
      %1079 = vmatprep.subr.mxu0 %v678
      %1080 = vmatpush1.msra.mxu0 %v677
      %1081 = vmatprep.subr.mxu0 %v682
      %1082 = vmatpush1.msra.mxu0 %v681
      %1083 = vmatprep.subr.mxu0 %v686
      %1084 = vmatpush1.msra.mxu0 %v685
      %1085 = vmatprep.subr.mxu0 %v690
      %1086 = vmatpush1.msra.mxu0 %v689
      %1087 = vmatprep.subr.mxu0 %v694
      %1088 = vmatpush1.msra.mxu0 %v693
      %1089 = vmatprep.subr.mxu0 %v698
      %1090 = vmatpush1.msra.mxu0 %v697
      %1091 = vmatprep.subr.mxu0 %v702
      %1092 = vmatpush1.msra.mxu0 %v701
      %1093 = vmatprep.subr.mxu0 %v706
      %1094 = vmatpush1.msra.mxu0 %v705
      %1095 = vmatprep.subr.mxu0 %v710
      %1096 = vmatpush1.msra.mxu0 %v709
      %1097 = vmatprep.subr.mxu0 %v714
      %1098 = vmatpush1.msra.mxu0 %v713
      %1099 = vmatprep.subr.mxu0 %v718
      %1100 = vmatpush1.msra.mxu0 %v717
      %1101 = vmatprep.subr.mxu0 %v722
      %1102 = vmatpush1.msra.mxu0 %v721
      %1103 = vmatprep.subr.mxu0 %v726
      %1104 = vmatpush1.msra.mxu0 %v725
      %1105 = vmatprep.subr.mxu0 %v730
      %1106 = vmatpush1.msra.mxu0 %v729
      %1107 = vmatprep.subr.mxu0 %v734
      %1108 = vmatpush1.msra.mxu0 %v733
      %1109 = vmatprep.subr.mxu0 %v738
      %1110 = vmatpush1.msra.mxu0 %v737
      %1111 = vmatprep.subr.mxu0 %v742
      %1112 = vmatpush1.msra.mxu0 %v741
      %1113 = vmatprep.subr.mxu0 %v746
      %1114 = vmatpush1.msra.mxu0 %v745
      %1115 = vmatprep.subr.mxu0 %v750
      %1116 = vmatpush1.msra.mxu0 %v749
      %1117 = vmatprep.subr.mxu0 %v754
      %1118 = vmatpush1.msra.mxu0 %v753
      %1119 = vmatprep.subr.mxu0 %v758
      %1120 = vmatpush1.msra.mxu0 %v757
      %1121 = vmatprep.subr.mxu0 %v762
      %1122 = vmatpush1.msra.mxu0 %v761
      %1123 = vmatprep.subr.mxu0 %v766
      %1124 = vmatpush1.msra.mxu0 %v765
      %1125 = vmatprep.subr.mxu0 %v770
      %1126 = vmatpush1.msra.mxu0 %v769
      %1127 = vmatprep.subr.mxu0 %v774
      %1128 = vmatpush1.msra.mxu0 %v773
      %1129 = vmatprep.subr.mxu0 %v778
      %1130 = vmatpush1.msra.mxu0 %v777
      %1131 = vmatprep.subr.mxu0 %v782
      %1132 = vmatpush1.msra.mxu0 %v781
      %1133 = vmatprep.subr.mxu0 %v786
      %1134 = vmatpush1.msra.mxu0 %v785
      %1135 = vmatprep.subr.mxu0 %v790
      %1136 = vmatpush1.msra.mxu0 %v789
      %1137 = vmatprep.subr.mxu0 %v794
      %1138 = vmatpush1.msra.mxu0 %v793
      %1139 = vmatprep.mubr.f32.mxu0 %v664
      %1140 = vmatmul.mubr.f32.gmra.mrb[0].mxu0 %v663
      %v1141 = vpop.f32.mrb[0].mxu0
      %v1142 = vadd.f32 %v1058, %v1141
      %v1143 = vpop.f32.mrb[0].mxu0
      %v1144 = vadd.f32 %v1062, %v1143
      %1145 = vdwg.mxu0
      %1146 = vmatprep.subr.mxu0 %v798
      %1147 = vmatpush1.msra.mxu0 %v797
      %1148 = vmatprep.subr.mxu0 %v802
      %1149 = vmatpush1.msra.mxu0 %v801
      %1150 = vmatprep.subr.mxu0 %v806
      %1151 = vmatpush1.msra.mxu0 %v805
      %1152 = vmatprep.subr.mxu0 %v810
      %1153 = vmatpush1.msra.mxu0 %v809
      %1154 = vmatprep.subr.mxu0 %v814
      %1155 = vmatpush1.msra.mxu0 %v813
      %1156 = vmatprep.subr.mxu0 %v818
      %1157 = vmatpush1.msra.mxu0 %v817
      %1158 = vmatprep.subr.mxu0 %v822
      %1159 = vmatpush1.msra.mxu0 %v821
      %1160 = vmatprep.subr.mxu0 %v826
      %1161 = vmatpush1.msra.mxu0 %v825
      %1162 = vmatprep.subr.mxu0 %v830
      %1163 = vmatpush1.msra.mxu0 %v829
      %1164 = vmatprep.subr.mxu0 %v834
      %1165 = vmatpush1.msra.mxu0 %v833
      %1166 = vmatprep.subr.mxu0 %v838
      %1167 = vmatpush1.msra.mxu0 %v837
      %1168 = vmatprep.subr.mxu0 %v842
      %1169 = vmatpush1.msra.mxu0 %v841
      %1170 = vmatprep.subr.mxu0 %v846
      %1171 = vmatpush1.msra.mxu0 %v845
      %1172 = vmatprep.subr.mxu0 %v850
      %1173 = vmatpush1.msra.mxu0 %v849
      %1174 = vmatprep.subr.mxu0 %v854
      %1175 = vmatpush1.msra.mxu0 %v853
      %1176 = vmatprep.subr.mxu0 %v858
      %1177 = vmatpush1.msra.mxu0 %v857
      %1178 = vmatprep.subr.mxu0 %v862
      %1179 = vmatpush1.msra.mxu0 %v861
      %1180 = vmatprep.subr.mxu0 %v866
      %1181 = vmatpush1.msra.mxu0 %v865
      %1182 = vmatprep.subr.mxu0 %v870
      %1183 = vmatpush1.msra.mxu0 %v869
      %1184 = vmatprep.subr.mxu0 %v874
      %1185 = vmatpush1.msra.mxu0 %v873
      %1186 = vmatprep.subr.mxu0 %v878
      %1187 = vmatpush1.msra.mxu0 %v877
      %1188 = vmatprep.subr.mxu0 %v882
      %1189 = vmatpush1.msra.mxu0 %v881
      %1190 = vmatprep.subr.mxu0 %v886
      %1191 = vmatpush1.msra.mxu0 %v885
      %1192 = vmatprep.subr.mxu0 %v890
      %1193 = vmatpush1.msra.mxu0 %v889
      %1194 = vmatprep.subr.mxu0 %v894
      %1195 = vmatpush1.msra.mxu0 %v893
      %1196 = vmatprep.subr.mxu0 %v898
      %1197 = vmatpush1.msra.mxu0 %v897
      %1198 = vmatprep.subr.mxu0 %v902
      %1199 = vmatpush1.msra.mxu0 %v901
      %1200 = vmatprep.subr.mxu0 %v906
      %1201 = vmatpush1.msra.mxu0 %v905
      %1202 = vmatprep.subr.mxu0 %v910
      %1203 = vmatpush1.msra.mxu0 %v909
      %1204 = vmatprep.subr.mxu0 %v914
      %1205 = vmatpush1.msra.mxu0 %v913
      %1206 = vmatprep.subr.mxu0 %v918
      %1207 = vmatpush1.msra.mxu0 %v917
      %1208 = vmatprep.subr.mxu0 %v922
      %1209 = vmatpush1.msra.mxu0 %v921
      %1210 = vmatprep.mubr.f32.mxu0 %v666
      %1211 = vmatmul.mubr.f32.gmra.mrb[0].mxu0 %v665
      %v1212 = vpop.f32.mrb[0].mxu0
      %v1213 = vadd.f32 %v1142, %v1212
      %v1214 = vpop.f32.mrb[0].mxu0
      %v1215 = vadd.f32 %v1144, %v1214
      %1216 = vdwg.mxu0
      %1217 = vmatprep.subr.mxu0 %v926
      %1218 = vmatpush1.msra.mxu0 %v925
      %1219 = vmatprep.subr.mxu0 %v930
      %1220 = vmatpush1.msra.mxu0 %v929
      %1221 = vmatprep.subr.mxu0 %v934
      %1222 = vmatpush1.msra.mxu0 %v933
      %1223 = vmatprep.subr.mxu0 %v938
      %1224 = vmatpush1.msra.mxu0 %v937
      %1225 = vmatprep.subr.mxu0 %v942
      %1226 = vmatpush1.msra.mxu0 %v941
      %1227 = vmatprep.subr.mxu0 %v946
      %1228 = vmatpush1.msra.mxu0 %v945
      %1229 = vmatprep.subr.mxu0 %v950
      %1230 = vmatpush1.msra.mxu0 %v949
      %1231 = vmatprep.subr.mxu0 %v954
      %1232 = vmatpush1.msra.mxu0 %v953
      %1233 = vmatprep.subr.mxu0 %v958
      %1234 = vmatpush1.msra.mxu0 %v957
      %1235 = vmatprep.subr.mxu0 %v962
      %1236 = vmatpush1.msra.mxu0 %v961
      %1237 = vmatprep.subr.mxu0 %v966
      %1238 = vmatpush1.msra.mxu0 %v965
      %1239 = vmatprep.subr.mxu0 %v970
      %1240 = vmatpush1.msra.mxu0 %v969
      %1241 = vmatprep.subr.mxu0 %v974
      %1242 = vmatpush1.msra.mxu0 %v973
      %1243 = vmatprep.subr.mxu0 %v978
      %1244 = vmatpush1.msra.mxu0 %v977
      %1245 = vmatprep.subr.mxu0 %v982
      %1246 = vmatpush1.msra.mxu0 %v981
      %1247 = vmatprep.subr.mxu0 %v986
      %1248 = vmatpush1.msra.mxu0 %v985
      %1249 = vmatprep.subr.mxu0 %v990
      %1250 = vmatpush1.msra.mxu0 %v989
      %1251 = vmatprep.subr.mxu0 %v994
      %1252 = vmatpush1.msra.mxu0 %v993
      %1253 = vmatprep.subr.mxu0 %v998
      %1254 = vmatpush1.msra.mxu0 %v997
      %1255 = vmatprep.subr.mxu0 %v1002
      %1256 = vmatpush1.msra.mxu0 %v1001
      %1257 = vmatprep.subr.mxu0 %v1006
      %1258 = vmatpush1.msra.mxu0 %v1005
      %1259 = vmatprep.subr.mxu0 %v1010
      %1260 = vmatpush1.msra.mxu0 %v1009
      %1261 = vmatprep.subr.mxu0 %v1014
      %1262 = vmatpush1.msra.mxu0 %v1013
      %1263 = vmatprep.subr.mxu0 %v1018
      %1264 = vmatpush1.msra.mxu0 %v1017
      %1265 = vmatprep.subr.mxu0 %v1022
      %1266 = vmatpush1.msra.mxu0 %v1021
      %1267 = vmatprep.subr.mxu0 %v1026
      %1268 = vmatpush1.msra.mxu0 %v1025
      %1269 = vmatprep.subr.mxu0 %v1030
      %1270 = vmatpush1.msra.mxu0 %v1029
      %1271 = vmatprep.subr.mxu0 %v1034
      %1272 = vmatpush1.msra.mxu0 %v1033
      %1273 = vmatprep.subr.mxu0 %v1038
      %1274 = vmatpush1.msra.mxu0 %v1037
      %1275 = vmatprep.subr.mxu0 %v1042
      %1276 = vmatpush1.msra.mxu0 %v1041
      %1277 = vmatprep.subr.mxu0 %v1046
      %1278 = vmatpush1.msra.mxu0 %v1045
      %1279 = vmatprep.subr.mxu0 %v1050
      %1280 = vmatpush1.msra.mxu0 %v1049
      %1281 = vmatprep.mubr.f32.mxu0 %v668
      %1282 = vmatmul.mubr.f32.gmra.mrb[0].mxu0 %v667
      %v1283 = vpop.f32.mrb[0].mxu0
      %v1284 = vadd.f32 %v1213, %v1283
      %v1285 = vpop.f32.mrb[0].mxu0
      %v1286 = vadd.f32 %v1215, %v1285
      %1287 = vdwg.mxu0
      %1288 = vmatprep.subr.mxu0 %v672
      %1289 = vmatpush1.msra.mxu0 %v671
      %1290 = vmatprep.subr.mxu0 %v676
      %1291 = vmatpush1.msra.mxu0 %v675
      %1292 = vmatprep.subr.mxu0 %v680
      %1293 = vmatpush1.msra.mxu0 %v679
      %1294 = vmatprep.subr.mxu0 %v684
      %1295 = vmatpush1.msra.mxu0 %v683
      %1296 = vmatprep.subr.mxu0 %v688
      %1297 = vmatpush1.msra.mxu0 %v687
      %1298 = vmatprep.subr.mxu0 %v692
      %1299 = vmatpush1.msra.mxu0 %v691
      %1300 = vmatprep.subr.mxu0 %v696
      %1301 = vmatpush1.msra.mxu0 %v695
      %1302 = vmatprep.subr.mxu0 %v700
      %1303 = vmatpush1.msra.mxu0 %v699
      %1304 = vmatprep.subr.mxu0 %v704
      %1305 = vmatpush1.msra.mxu0 %v703
      %1306 = vmatprep.subr.mxu0 %v708
      %1307 = vmatpush1.msra.mxu0 %v707
      %1308 = vmatprep.subr.mxu0 %v712
      %1309 = vmatpush1.msra.mxu0 %v711
      %1310 = vmatprep.subr.mxu0 %v716
      %1311 = vmatpush1.msra.mxu0 %v715
      %1312 = vmatprep.subr.mxu0 %v720
      %1313 = vmatpush1.msra.mxu0 %v719
      %1314 = vmatprep.subr.mxu0 %v724
      %1315 = vmatpush1.msra.mxu0 %v723
      %1316 = vmatprep.subr.mxu0 %v728
      %1317 = vmatpush1.msra.mxu0 %v727
      %1318 = vmatprep.subr.mxu0 %v732
      %1319 = vmatpush1.msra.mxu0 %v731
      %1320 = vmatprep.subr.mxu0 %v736
      %1321 = vmatpush1.msra.mxu0 %v735
      %1322 = vmatprep.subr.mxu0 %v740
      %1323 = vmatpush1.msra.mxu0 %v739
      %1324 = vmatprep.subr.mxu0 %v744
      %1325 = vmatpush1.msra.mxu0 %v743
      %1326 = vmatprep.subr.mxu0 %v748
      %1327 = vmatpush1.msra.mxu0 %v747
      %1328 = vmatprep.subr.mxu0 %v752
      %1329 = vmatpush1.msra.mxu0 %v751
      %1330 = vmatprep.subr.mxu0 %v756
      %1331 = vmatpush1.msra.mxu0 %v755
      %1332 = vmatprep.subr.mxu0 %v760
      %1333 = vmatpush1.msra.mxu0 %v759
      %1334 = vmatprep.subr.mxu0 %v764
      %1335 = vmatpush1.msra.mxu0 %v763
      %1336 = vmatprep.subr.mxu0 %v768
      %1337 = vmatpush1.msra.mxu0 %v767
      %1338 = vmatprep.subr.mxu0 %v772
      %1339 = vmatpush1.msra.mxu0 %v771
      %1340 = vmatprep.subr.mxu0 %v776
      %1341 = vmatpush1.msra.mxu0 %v775
      %1342 = vmatprep.subr.mxu0 %v780
      %1343 = vmatpush1.msra.mxu0 %v779
      %1344 = vmatprep.subr.mxu0 %v784
      %1345 = vmatpush1.msra.mxu0 %v783
      %1346 = vmatprep.subr.mxu0 %v788
      %1347 = vmatpush1.msra.mxu0 %v787
      %1348 = vmatprep.subr.mxu0 %v792
      %1349 = vmatpush1.msra.mxu0 %v791
      %1350 = vmatprep.subr.mxu0 %v796
      %1351 = vmatpush1.msra.mxu0 %v795
      %1352 = vmatprep.mubr.f32.mxu0 %v664
      %1353 = vmatmul.mubr.f32.gmra.mrb[0].mxu0 %v663
      %v1354 = vpop.f32.mrb[0].mxu0
      %v1355 = vadd.f32 %v1066, %v1354
      %v1356 = vpop.f32.mrb[0].mxu0
      %v1357 = vadd.f32 %v1070, %v1356
      %1358 = vdwg.mxu0
      %1359 = vmatprep.subr.mxu0 %v800
      %1360 = vmatpush1.msra.mxu0 %v799
      %1361 = vmatprep.subr.mxu0 %v804
      %1362 = vmatpush1.msra.mxu0 %v803
      %1363 = vmatprep.subr.mxu0 %v808
      %1364 = vmatpush1.msra.mxu0 %v807
      %1365 = vmatprep.subr.mxu0 %v812
      %1366 = vmatpush1.msra.mxu0 %v811
      %1367 = vmatprep.subr.mxu0 %v816
      %1368 = vmatpush1.msra.mxu0 %v815
      %1369 = vmatprep.subr.mxu0 %v820
      %1370 = vmatpush1.msra.mxu0 %v819
      %1371 = vmatprep.subr.mxu0 %v824
      %1372 = vmatpush1.msra.mxu0 %v823
      %1373 = vmatprep.subr.mxu0 %v828
      %1374 = vmatpush1.msra.mxu0 %v827
      %1375 = vmatprep.subr.mxu0 %v832
      %1376 = vmatpush1.msra.mxu0 %v831
      %1377 = vmatprep.subr.mxu0 %v836
      %1378 = vmatpush1.msra.mxu0 %v835
      %1379 = vmatprep.subr.mxu0 %v840
      %1380 = vmatpush1.msra.mxu0 %v839
      %1381 = vmatprep.subr.mxu0 %v844
      %1382 = vmatpush1.msra.mxu0 %v843
      %1383 = vmatprep.subr.mxu0 %v848
      %1384 = vmatpush1.msra.mxu0 %v847
      %1385 = vmatprep.subr.mxu0 %v852
      %1386 = vmatpush1.msra.mxu0 %v851
      %1387 = vmatprep.subr.mxu0 %v856
      %1388 = vmatpush1.msra.mxu0 %v855
      %1389 = vmatprep.subr.mxu0 %v860
      %1390 = vmatpush1.msra.mxu0 %v859
      %1391 = vmatprep.subr.mxu0 %v864
      %1392 = vmatpush1.msra.mxu0 %v863
      %1393 = vmatprep.subr.mxu0 %v868
      %1394 = vmatpush1.msra.mxu0 %v867
      %1395 = vmatprep.subr.mxu0 %v872
      %1396 = vmatpush1.msra.mxu0 %v871
      %1397 = vmatprep.subr.mxu0 %v876
      %1398 = vmatpush1.msra.mxu0 %v875
      %1399 = vmatprep.subr.mxu0 %v880
      %1400 = vmatpush1.msra.mxu0 %v879
      %1401 = vmatprep.subr.mxu0 %v884
      %1402 = vmatpush1.msra.mxu0 %v883
      %1403 = vmatprep.subr.mxu0 %v888
      %1404 = vmatpush1.msra.mxu0 %v887
      %1405 = vmatprep.subr.mxu0 %v892
      %1406 = vmatpush1.msra.mxu0 %v891
      %1407 = vmatprep.subr.mxu0 %v896
      %1408 = vmatpush1.msra.mxu0 %v895
      %1409 = vmatprep.subr.mxu0 %v900
      %1410 = vmatpush1.msra.mxu0 %v899
      %1411 = vmatprep.subr.mxu0 %v904
      %1412 = vmatpush1.msra.mxu0 %v903
      %1413 = vmatprep.subr.mxu0 %v908
      %1414 = vmatpush1.msra.mxu0 %v907
      %1415 = vmatprep.subr.mxu0 %v912
      %1416 = vmatpush1.msra.mxu0 %v911
      %1417 = vmatprep.subr.mxu0 %v916
      %1418 = vmatpush1.msra.mxu0 %v915
      %1419 = vmatprep.subr.mxu0 %v920
      %1420 = vmatpush1.msra.mxu0 %v919
      %1421 = vmatprep.subr.mxu0 %v924
      %1422 = vmatpush1.msra.mxu0 %v923
      %1423 = vmatprep.mubr.f32.mxu0 %v666
      %1424 = vmatmul.mubr.f32.gmra.mrb[0].mxu0 %v665
      %v1425 = vpop.f32.mrb[0].mxu0
      %v1426 = vadd.f32 %v1355, %v1425
      %v1427 = vpop.f32.mrb[0].mxu0
      %v1428 = vadd.f32 %v1357, %v1427
      %1429 = vdwg.mxu0
      %1430 = vmatprep.subr.mxu0 %v928
      %1431 = vmatpush1.msra.mxu0 %v927
      %1432 = vmatprep.subr.mxu0 %v932
      %1433 = vmatpush1.msra.mxu0 %v931
      %1434 = vmatprep.subr.mxu0 %v936
      %1435 = vmatpush1.msra.mxu0 %v935
      %1436 = vmatprep.subr.mxu0 %v940
      %1437 = vmatpush1.msra.mxu0 %v939
      %1438 = vmatprep.subr.mxu0 %v944
      %1439 = vmatpush1.msra.mxu0 %v943
      %1440 = vmatprep.subr.mxu0 %v948
      %1441 = vmatpush1.msra.mxu0 %v947
      %1442 = vmatprep.subr.mxu0 %v952
      %1443 = vmatpush1.msra.mxu0 %v951
      %1444 = vmatprep.subr.mxu0 %v956
      %1445 = vmatpush1.msra.mxu0 %v955
      %1446 = vmatprep.subr.mxu0 %v960
      %1447 = vmatpush1.msra.mxu0 %v959
      %1448 = vmatprep.subr.mxu0 %v964
      %1449 = vmatpush1.msra.mxu0 %v963
      %1450 = vmatprep.subr.mxu0 %v968
      %1451 = vmatpush1.msra.mxu0 %v967
      %1452 = vmatprep.subr.mxu0 %v972
      %1453 = vmatpush1.msra.mxu0 %v971
      %1454 = vmatprep.subr.mxu0 %v976
      %1455 = vmatpush1.msra.mxu0 %v975
      %1456 = vmatprep.subr.mxu0 %v980
      %1457 = vmatpush1.msra.mxu0 %v979
      %1458 = vmatprep.subr.mxu0 %v984
      %1459 = vmatpush1.msra.mxu0 %v983
      %1460 = vmatprep.subr.mxu0 %v988
      %1461 = vmatpush1.msra.mxu0 %v987
      %1462 = vmatprep.subr.mxu0 %v992
      %1463 = vmatpush1.msra.mxu0 %v991
      %1464 = vmatprep.subr.mxu0 %v996
      %1465 = vmatpush1.msra.mxu0 %v995
      %1466 = vmatprep.subr.mxu0 %v1000
      %1467 = vmatpush1.msra.mxu0 %v999
      %1468 = vmatprep.subr.mxu0 %v1004
      %1469 = vmatpush1.msra.mxu0 %v1003
      %1470 = vmatprep.subr.mxu0 %v1008
      %1471 = vmatpush1.msra.mxu0 %v1007
      %1472 = vmatprep.subr.mxu0 %v1012
      %1473 = vmatpush1.msra.mxu0 %v1011
      %1474 = vmatprep.subr.mxu0 %v1016
      %1475 = vmatpush1.msra.mxu0 %v1015
      %1476 = vmatprep.subr.mxu0 %v1020
      %1477 = vmatpush1.msra.mxu0 %v1019
      %1478 = vmatprep.subr.mxu0 %v1024
      %1479 = vmatpush1.msra.mxu0 %v1023
      %1480 = vmatprep.subr.mxu0 %v1028
      %1481 = vmatpush1.msra.mxu0 %v1027
      %1482 = vmatprep.subr.mxu0 %v1032
      %1483 = vmatpush1.msra.mxu0 %v1031
      %1484 = vmatprep.subr.mxu0 %v1036
      %1485 = vmatpush1.msra.mxu0 %v1035
      %1486 = vmatprep.subr.mxu0 %v1040
      %1487 = vmatpush1.msra.mxu0 %v1039
      %1488 = vmatprep.subr.mxu0 %v1044
      %1489 = vmatpush1.msra.mxu0 %v1043
      %1490 = vmatprep.subr.mxu0 %v1048
      %1491 = vmatpush1.msra.mxu0 %v1047
      %1492 = vmatprep.subr.mxu0 %v1052
      %1493 = vmatpush1.msra.mxu0 %v1051
      %1494 = vmatprep.mubr.f32.mxu0 %v668
      %1495 = vmatmul.mubr.f32.gmra.mrb[0].mxu0 %v667
      %v1496 = vpop.f32.mrb[0].mxu0
      %v1497 = vadd.f32 %v1426, %v1496
      %v1498 = vpop.f32.mrb[0].mxu0
      %v1499 = vadd.f32 %v1428, %v1498
      %1500 = vdwg.mxu0
      %v1501 = vmul.f32 %v1284, %v1284
      %v1502 = vmul.f32 %v1286, %v1286
      %v1503 = vmul.f32 %v1497, %v1497
      %v1504 = vmul.f32 %v1499, %v1499
      %v1505 = vadd.f32 %v1501, %v1502
      %v1506 = vadd.f32 %v1505, %v1503
      %v1507 = vadd.f32 %v1506, %v1504
      %1508 = vadd.xlane.f32.xlu0 %v1507
      %v1509 = vpop.xlane.xlu0 %1508
      %v1510 = vmax.f32 %v1509, 1e-24
      %v1511 = vrsqrt.pop %v1510
      %v1512 = vmul.f32 %v1284, %v1511
      %v1513 = vmul.f32 %v1286, %v1511
      %v1514 = vmul.f32 %v1497, %v1511
      %v1515 = vmul.f32 %v1499, %v1511
      %v1520 = vcombine.low %v1512, %v1513
      %v1521 = vcombine.high %v1512, %v1513
      %v1522 = vcombine.low %v1514, %v1515
      %v1523 = vcombine.high %v1514, %v1515
      %v1525 = vunpack.c.l.s4 1983009808
      %v1526 = vunpack.c.0.s8 %v1525
      %v1527 = vlaneseq
      %v1528 = vshrl.u32 %v1527, 7
      %v1529 = vsub.s32 %v1526, %v1528
      %v1530 = vrot.slane %v1520, %v1529
      %v1532 = vunpack.c.l.s4 1983009808
      %v1533 = vunpack.c.0.s8 %v1532
      %v1534 = vlaneseq
      %v1535 = vshrl.u32 %v1534, 7
      %v1536 = vsub.s32 %v1533, %v1535
      %v1537 = vrot.slane %v1521, %v1536
      %v1539 = vunpack.c.l.s4 1983009808
      %v1540 = vunpack.c.0.s8 %v1539
      %v1541 = vlaneseq
      %v1542 = vshrl.u32 %v1541, 7
      %v1543 = vsub.s32 %v1540, %v1542
      %v1544 = vrot.slane %v1522, %v1543
      %v1546 = vunpack.c.l.s4 1983009808
      %v1547 = vunpack.c.0.s8 %v1546
      %v1548 = vlaneseq
      %v1549 = vshrl.u32 %v1548, 7
      %v1550 = vsub.s32 %v1547, %v1549
      %v1551 = vrot.slane %v1523, %v1550
      %v1552 = vcombine.low %v1530, %v1544
      %v1553 = vcombine.high %v1530, %v1544
      %v1554 = vcombine.low %v1537, %v1551
      %v1555 = vcombine.high %v1537, %v1551
      %1560 = vst [vmem:[#allocation9] sm:$0xff] %v1552
      %1561 = vst [vmem:[#allocation9 + $0x8] sm:$0xff] %v1553
      %1562 = vst [vmem:[#allocation9 + $0x10] sm:$0xff] %v1554
      %1563 = vst [vmem:[#allocation9 + $0x18] sm:$0xff] %v1555
    $region41: #{contrastive_head.1} parent=1 // pred_fallthru
      _
    // Predicated region
    $region42: #{contrastive_head.1} parent=1 // pred_check
      _
    $region43: #{contrastive_head.1} parent=1 // pred_check_branch
      %1565 = sbr.rel (0) target = $region45
    $region44: #{contrastive_head.1} parent=1 // pred_region
      %s1567 = ssub.s32 512, 128
      %1568 = vsyncadd [#allocation5], %s1567
      %s1569 = sshll.u32 [#allocation9], 4
      %s1570 = int_to_ptr.vmem [resolvable:$true] %s1569
      %1575 = dma.vmem_to_hbm [thread:$0]  %s1570, 128, %s5, [#allocation5], 128, 128, 8
    $region45: #{contrastive_head.1} parent=1 // pred_fallthru
      _
    // Predicated region
    $region46: #{contrastive_head.1} parent=1 // pred_check
      _
    $region47: #{contrastive_head.1} parent=1 // pred_check_branch
      %1577 = sbr.rel (0) target = $region49
    $region48: #{contrastive_head.1} parent=1 // pred_region
      %1578 = dma.done [#allocation5], 512
    $region49: #{contrastive_head.1} parent=1 // pred_fallthru
      _
    %1579 = vsyncpa [#allocation4], 1
    %1580 = vsyncpa [#allocation7], 1
    %1581 = vsyncpa [#allocation5], 1

</llo_original>
